<compile_context>
chip_gen: v7x
topology: tpu7x:2x2x1
jax: 0.10.0
libtpu: 0.0.40
codegen_flags: <defaults>
</compile_context>

<pallas_src>
import functools

import numpy as np

import jax
import jax.numpy as jnp
from jax.experimental import pallas as pl
from jax.experimental.pallas import tpu as pltpu

TOP_DOWN_PYRAMID_SIZE = 256


# ---------------------------------------------------------------------------
# Fused Pallas kernel: P5/P4/P3 for one (batch, row-slab) tile.
# All refs are 2-D (rows, channels) so every op is a plain matmul / add.
# ---------------------------------------------------------------------------
def _fpn_fused_kernel(x3_ref, x4_ref, x5_ref,
                      w3_ref, b3_ref, w4_ref, b4_ref, w5_ref, b5_ref,
                      s43_ref, s54_ref,
                      p3_ref, p4_ref, p5_ref):
    f32 = jnp.float32

    # P5 = c5 @ w5 + b5
    p5 = jnp.dot(x5_ref[...], w5_ref[...], preferred_element_type=f32) + b5_ref[...]
    p5_ref[...] = p5.astype(p5_ref.dtype)

    # P4 = c4 @ w4 + b4 + nearest_upsample(P5)
    # (upsample == 0/1 selection-matrix matmul, kept resident in VMEM)
    p5_up = jnp.dot(s54_ref[...], p5, preferred_element_type=f32)
    p4 = (jnp.dot(x4_ref[...], w4_ref[...], preferred_element_type=f32)
          + b4_ref[...] + p5_up)
    p4_ref[...] = p4.astype(p4_ref.dtype)

    # P3 = c3 @ w3 + b3 + nearest_upsample(P4)
    p4_up = jnp.dot(s43_ref[...], p4, preferred_element_type=f32)
    p3 = (jnp.dot(x3_ref[...], w3_ref[...], preferred_element_type=f32)
          + b3_ref[...] + p4_up)
    p3_ref[...] = p3.astype(p3_ref.dtype)


# ---------------------------------------------------------------------------
# Helpers
# ---------------------------------------------------------------------------
def _nearest_selection_matrix(h_out, w_out, h_in, w_in, rh, rw):
    """S[o, i] = 1 iff flat output pixel o nearest-samples flat input pixel i.

    Exactly matches F.interpolate(mode='nearest') for integer ratios
    (src = floor(dst * in / out) == dst // ratio).  Identical for every tile.
    """
    o = np.arange(h_out * w_out)
    src = (o // w_out // rh) * w_in + (o % w_out) // rw
    s = np.zeros((h_out * w_out, h_in * w_in), dtype=np.float32)
    s[o, src] = 1.0
    return s


def _choose_tile_h(H3, W3, C3, H4, W4, C4, H5, W5, C5, Cout,
                   rh3, rh4, n_batch, itemsize, budget_bytes):
    """Pick the P3 row-tile height: divides H3, aligned to the pyramid
    strides, fits a VMEM budget, and prefers >=2 total grid steps (v7x)."""
    step = rh3 * rh4
    cands = [t for t in range(step, H3 + 1, step) if H3 % t == 0]
    cands.sort(reverse=True)

    def sizes(th3):
        th4, th5 = th3 // rh3, th3 // (rh3 * rh4)
        return th3 * W3, th4 * W4, th5 * W5

    def ok(th3):
        m3, m4, m5 = sizes(th3)
        return m3 % 8 == 0 and m4 % 8 == 0 and m5 % 8 == 0

    def est_bytes(th3):
        m3, m4, m5 = sizes(th3)
        io = (m3 * (C3 + Cout) + m4 * (C4 + Cout) + m5 * (C5 + Cout)) * itemsize
        sel = (m3 * m4 + m4 * m5) * itemsize
        wts = (C3 + C4 + C5 + 3) * Cout * itemsize
        acc = (m3 + m4) * Cout * 4          # f32 residual temporaries
        return 2 * (io + sel + wts) + acc   # x2: double-buffered pipeline

    fitting = [t for t in cands if ok(t) and est_bytes(t) <= budget_bytes]
    if not fitting:
        # TODO(synk): pad tiny / awkward spatial shapes instead of falling back.
        fitting = [t for t in cands if ok(t)] or cands
    th3 = fitting[0]
    if n_batch * (H3 // th3) < 2:
        for t in fitting:                   # descending -> largest with >=2 steps
            if n_batch * (H3 // t) >= 2:
                th3 = t
                break
    return th3


# ---------------------------------------------------------------------------
# Wrapper: whole FPN top-down pass in one pallas_call.
# ---------------------------------------------------------------------------
@jax.jit
def get_fpn_features(params, c3, c4, c5):
    """Forward pass of get_FPN_features. Inputs/outputs NCHW (PyTorch layout)."""
    n, C3, H3, W3 = c3.shape
    _, C4, H4, W4 = c4.shape
    _, C5, H5, W5 = c5.shape
    Cout = params["p3_w"].shape[0]
    dtype = c3.dtype
    itemsize = jnp.dtype(dtype).itemsize

    # FPN pyramids always have integer stride ratios; nearest == replication.
    if not (H3 % H4 == 0 and W3 % W4 == 0 and H4 % H5 == 0 and W4 % W5 == 0):
        # TODO(synk): gather-based path for non-integer nearest-resize ratios.
        raise NotImplementedError("non-integer FPN upsample ratios not supported")
    rh3, rw3 = H3 // H4, W3 // W4
    rh4, rw4 = H4 // H5, W4 // W5

    th3 = _choose_tile_h(H3, W3, C3, H4, W4, C4, H5, W5, C5, Cout,
                         rh3, rh4, n, itemsize, budget_bytes=24 * 1024 * 1024)
    th4, th5 = th3 // rh3, th3 // (rh3 * rh4)
    T = H3 // th3
    m3, m4, m5 = th3 * W3, th4 * W4, th5 * W5

    # One NCHW->NHWC transpose per input; the (M, C) flatten itself is free.
    x3 = jnp.transpose(c3, (0, 2, 3, 1)).reshape(n * H3 * W3, C3)
    x4 = jnp.transpose(c4, (0, 2, 3, 1)).reshape(n * H4 * W4, C4)
    x5 = jnp.transpose(c5, (0, 2, 3, 1)).reshape(n * H5 * W5, C5)

    # Pre-transposed (Cin, Cout) weights and (1, Cout) biases (tiny).
    w3 = jnp.transpose(params["p3_w"].reshape(Cout, C3)).astype(dtype)
    w4 = jnp.transpose(params["p4_w"].reshape(Cout, C4)).astype(dtype)
    w5 = jnp.transpose(params["p5_w"].reshape(Cout, C5)).astype(dtype)
    b3 = params["p3_b"].reshape(1, Cout).astype(dtype)
    b4 = params["p4_b"].reshape(1, Cout).astype(dtype)
    b5 = params["p5_b"].reshape(1, Cout).astype(dtype)

    # Per-tile nearest-upsample selection matrices (same block every step, so
    # the pipeline DMAs them once and keeps them resident).
    s43 = jnp.asarray(_nearest_selection_matrix(th3, W3, th4, W4, rh3, rw3), dtype)
    s54 = jnp.asarray(_nearest_selection_matrix(th4, W4, th5, W5, rh4, rw4), dtype)

    grid = (n, T)
    feat_idx = lambda b, i: (b * T + i, 0)
    const_idx = lambda b, i: (0, 0)

    in_specs = [
        pl.BlockSpec((m3, C3), feat_idx),
        pl.BlockSpec((m4, C4), feat_idx),
        pl.BlockSpec((m5, C5), feat_idx),
        pl.BlockSpec((C3, Cout), const_idx),
        pl.BlockSpec((1, Cout), const_idx),
        pl.BlockSpec((C4, Cout), const_idx),
        pl.BlockSpec((1, Cout), const_idx),
        pl.BlockSpec((C5, Cout), const_idx),
        pl.BlockSpec((1, Cout), const_idx),
        pl.BlockSpec((m3, m4), const_idx),
        pl.BlockSpec((m4, m5), const_idx),
    ]
    out_specs = (
        pl.BlockSpec((m3, Cout), feat_idx),
        pl.BlockSpec((m4, Cout), feat_idx),
        pl.BlockSpec((m5, Cout), feat_idx),
    )
    out_shape = (
        jax.ShapeDtypeStruct((n * H3 * W3, Cout), dtype),
        jax.ShapeDtypeStruct((n * H4 * W4, Cout), dtype),
        jax.ShapeDtypeStruct((n * H5 * W5, Cout), dtype),
    )

    # Advisory cost estimate so XLA schedules the entry/exit transposes around
    # the custom call instead of serializing.
    M3, M4, M5 = n * H3 * W3, n * H4 * W4, n * H5 * W5
    flops = (2 * Cout * (M3 * C3 + M4 * C4 + M5 * C5)
             + 2 * Cout * n * T * (m3 * m4 + m4 * m5))
    bytes_accessed = itemsize * (M3 * C3 + M4 * C4 + M5 * C5
                                 + Cout * (M3 + M4 + M5)
                                 + Cout * (C3 + C4 + C5 + 3)
                                 + m3 * m4 + m4 * m5)

    p3f, p4f, p5f = pl.pallas_call(
        _fpn_fused_kernel,
        out_shape=out_shape,
        grid_spec=pltpu.PrefetchScalarGridSpec(
            num_scalar_prefetch=0,
            grid=grid,
            in_specs=in_specs,
            out_specs=out_specs,
        ),
        compiler_params=pltpu.CompilerParams(
            dimension_semantics=("parallel", "parallel"),
            vmem_limit_bytes=48 * 1024 * 1024,
        ),
        cost_estimate=pl.CostEstimate(flops=int(flops), transcendentals=0,
                                      bytes_accessed=int(bytes_accessed)),
    )(x3, x4, x5, w3, b3, w4, b4, w5, b5, s43, s54)

    # Single NHWC->NCHW transpose per output.
    p3 = jnp.transpose(p3f.reshape(n, H3, W3, Cout), (0, 3, 1, 2))
    p4 = jnp.transpose(p4f.reshape(n, H4, W4, Cout), (0, 3, 1, 2))
    p5 = jnp.transpose(p5f.reshape(n, H5, W5, Cout), (0, 3, 1, 2))
    return p3, p4, p5


# ---------------------------------------------------------------------------
# Deterministic parameter init (kaiming_normal fan_out, relu) — matches spec.
# ---------------------------------------------------------------------------
def init_params(key, sizes, c_out=TOP_DOWN_PYRAMID_SIZE, dtype=jnp.float32):
    params = {}
    names = ["p3", "p4", "p5"]
    for name, c_in in zip(names, sizes):
        key, kw, kb = jax.random.split(key, 3)
        fan_out = c_out * 1 * 1
        std = (2.0 / fan_out) ** 0.5
        params[f"{name}_w"] = (std * jax.random.normal(kw, (c_out, c_in, 1, 1))).astype(dtype)
        bound = 1.0 / (c_in ** 0.5)
        params[f"{name}_b"] = jax.random.uniform(
            kb, (c_out,), minval=-bound, maxval=bound
        ).astype(dtype)
    return params


# ---------------------------------------------------------------------------
# Pure-JAX reference for a sanity check
# ---------------------------------------------------------------------------
def nearest_upsample_nchw(x, out_h, out_w):
    """F.interpolate(..., mode='nearest') semantics: src = floor(dst * in/out)."""
    in_h, in_w = x.shape[2], x.shape[3]
    src_h = (jnp.arange(out_h) * in_h) // out_h
    src_w = (jnp.arange(out_w) * in_w) // out_w
    x = jnp.take(x, src_h, axis=2)
    x = jnp.take(x, src_w, axis=3)
    return x


def _ref_conv1x1(x, w, b):
    return (jnp.einsum("nchw,oc->nohw", x, w.reshape(w.shape[0], w.shape[1]))
            + b[None, :, None, None])


def _ref_forward(params, c3, c4, c5):
    p5 = _ref_conv1x1(c5, params["p5_w"], params["p5_b"])
    p5_up = nearest_upsample_nchw(p5, c4.shape[2], c4.shape[3])
    p4 = _ref_conv1x1(c4, params["p4_w"], params["p4_b"]) + p5_up
    p4_up = nearest_upsample_nchw(p4, c3.shape[2], c3.shape[3])
    p3 = _ref_conv1x1(c3, params["p3_w"], params["p3_b"]) + p4_up
    return p3, p4, p5


if __name__ == "__main__":
    key = jax.random.PRNGKey(0)
    sizes = (8, 16, 32)        # (C3, C4, C5) input channel sizes
    batch = 2

    kp, k3, k4, k5 = jax.random.split(key, 4)
    params = init_params(kp, sizes)

    # FPN pyramid levels: c3 is 16x16, c4 is 8x8, c5 is 4x4 (stride-2 pyramid).
    c3 = jax.random.normal(k3, (batch, sizes[0], 16, 16), dtype=jnp.float32)
    c4 = jax.random.normal(k4, (batch, sizes[1], 8, 8), dtype=jnp.float32)
    c5 = jax.random.normal(k5, (batch, sizes[2], 4, 4), dtype=jnp.float32)

    p3, p4, p5 = get_fpn_features(params, c3, c4, c5)
    jax.block_until_ready((p3, p4, p5))

    # Sanity check against plain-JAX reference.
    r3, r4, r5 = _ref_forward(params, c3, c4, c5)
    assert p3.shape == (batch, 256, 16, 16)
    assert p4.shape == (batch, 256, 8, 8)
    assert p5.shape == (batch, 256, 4, 4)
    for got, ref in ((p3, r3), (p4, r4), (p5, r5)):
        assert jnp.allclose(got, ref, atol=2e-4, rtol=2e-4)

    print("KERNEL_OK")
</pallas_src>

<mosaic_0001>
module attributes {stable_mosaic.version = 11 : i64} {
  func.func @_fpn_fused_kernel(%arg0: i32, %arg1: i32, %arg2: memref<256x8xf32, #tpu.memory_space<vmem>>, %arg3: memref<64x16xf32, #tpu.memory_space<vmem>>, %arg4: memref<16x32xf32, #tpu.memory_space<vmem>>, %arg5: memref<8x256xf32, #tpu.memory_space<vmem>>, %arg6: memref<1x256xf32, #tpu.memory_space<vmem>>, %arg7: memref<16x256xf32, #tpu.memory_space<vmem>>, %arg8: memref<1x256xf32, #tpu.memory_space<vmem>>, %arg9: memref<32x256xf32, #tpu.memory_space<vmem>>, %arg10: memref<1x256xf32, #tpu.memory_space<vmem>>, %arg11: memref<256x64xf32, #tpu.memory_space<vmem>>, %arg12: memref<64x16xf32, #tpu.memory_space<vmem>>, %arg13: memref<256x256xf32, #tpu.memory_space<vmem>>, %arg14: memref<64x256xf32, #tpu.memory_space<vmem>>, %arg15: memref<16x256xf32, #tpu.memory_space<vmem>>) attributes {dimension_semantics = [#tpu.dimension_semantics<parallel>, #tpu.dimension_semantics<parallel>], iteration_bounds = array<i64: 2, 1>, scalar_prefetch = 0 : i64, scratch_operands = 0 : i64, tpu.core_type = #tpu.core_type<tc>, window_params = [{transform_indices = @transform_0, window_bounds = array<i64: 256, 8>}, {transform_indices = @transform_1, window_bounds = array<i64: 64, 16>}, {transform_indices = @transform_2, window_bounds = array<i64: 16, 32>}, {pipeline_mode = #tpu.pipeline_mode<synchronous>, transform_indices = @transform_3, window_bounds = array<i64: 8, 256>}, {pipeline_mode = #tpu.pipeline_mode<synchronous>, transform_indices = @transform_4, window_bounds = array<i64: 1, 256>}, {pipeline_mode = #tpu.pipeline_mode<synchronous>, transform_indices = @transform_5, window_bounds = array<i64: 16, 256>}, {pipeline_mode = #tpu.pipeline_mode<synchronous>, transform_indices = @transform_6, window_bounds = array<i64: 1, 256>}, {pipeline_mode = #tpu.pipeline_mode<synchronous>, transform_indices = @transform_7, window_bounds = array<i64: 32, 256>}, {pipeline_mode = #tpu.pipeline_mode<synchronous>, transform_indices = @transform_8, window_bounds = array<i64: 1, 256>}, {pipeline_mode = #tpu.pipeline_mode<synchronous>, transform_indices = @transform_9, window_bounds = array<i64: 256, 64>}, {pipeline_mode = #tpu.pipeline_mode<synchronous>, transform_indices = @transform_10, window_bounds = array<i64: 64, 16>}, {transform_indices = @transform_11, window_bounds = array<i64: 256, 256>}, {transform_indices = @transform_12, window_bounds = array<i64: 64, 256>}, {transform_indices = @transform_13, window_bounds = array<i64: 16, 256>}]} {
    %c0 = arith.constant 0 : index
    %c0_0 = arith.constant 0 : index
    %0 = vector.load %arg4[%c0, %c0_0] : memref<16x32xf32, #tpu.memory_space<vmem>>, vector<16x32xf32>
    %c0_1 = arith.constant 0 : index
    %c0_2 = arith.constant 0 : index
    %1 = vector.load %arg9[%c0_1, %c0_2] : memref<32x256xf32, #tpu.memory_space<vmem>>, vector<32x256xf32>
    %cst = arith.constant dense<0.000000e+00> : vector<16x256xf32>
    %2 = tpu.matmul %0, %1, %cst {dimension_numbers = #tpu.dot_dimension_numbers<[1], [0], [0], [1], [0, 0, 1, 1], [], []>} : vector<16x32xf32>, vector<32x256xf32>, vector<16x256xf32> -> vector<16x256xf32>
    %c0_3 = arith.constant 0 : index
    %c0_4 = arith.constant 0 : index
    %3 = vector.load %arg10[%c0_3, %c0_4] : memref<1x256xf32, #tpu.memory_space<vmem>>, vector<1x256xf32>
    %4 = vector.broadcast %3 : vector<1x256xf32> to vector<16x256xf32>
    %5 = arith.addf %2, %4 : vector<16x256xf32>
    %c0_5 = arith.constant 0 : index
    %c0_6 = arith.constant 0 : index
    %6 = vector.load %arg15[%c0_5, %c0_6] : memref<16x256xf32, #tpu.memory_space<vmem>>, vector<16x256xf32>
    tpu.vector_store %arg15[%c0_5, %c0_6], %5 {strides = array<i32>} : memref<16x256xf32, #tpu.memory_space<vmem>>, vector<16x256xf32>,
    %c0_7 = arith.constant 0 : index
    %c0_8 = arith.constant 0 : index
    %7 = vector.load %arg12[%c0_7, %c0_8] : memref<64x16xf32, #tpu.memory_space<vmem>>, vector<64x16xf32>
    %cst_9 = arith.constant dense<0.000000e+00> : vector<64x256xf32>
    %8 = tpu.matmul %7, %5, %cst_9 {dimension_numbers = #tpu.dot_dimension_numbers<[1], [0], [0], [1], [0, 0, 1, 1], [], []>} : vector<64x16xf32>, vector<16x256xf32>, vector<64x256xf32> -> vector<64x256xf32>
    %c0_10 = arith.constant 0 : index
    %c0_11 = arith.constant 0 : index
    %9 = vector.load %arg3[%c0_10, %c0_11] : memref<64x16xf32, #tpu.memory_space<vmem>>, vector<64x16xf32>
    %c0_12 = arith.constant 0 : index
    %c0_13 = arith.constant 0 : index
    %10 = vector.load %arg7[%c0_12, %c0_13] : memref<16x256xf32, #tpu.memory_space<vmem>>, vector<16x256xf32>
    %cst_14 = arith.constant dense<0.000000e+00> : vector<64x256xf32>
    %11 = tpu.matmul %9, %10, %cst_14 {dimension_numbers = #tpu.dot_dimension_numbers<[1], [0], [0], [1], [0, 0, 1, 1], [], []>} : vector<64x16xf32>, vector<16x256xf32>, vector<64x256xf32> -> vector<64x256xf32>
    %c0_15 = arith.constant 0 : index
    %c0_16 = arith.constant 0 : index
    %12 = vector.load %arg8[%c0_15, %c0_16] : memref<1x256xf32, #tpu.memory_space<vmem>>, vector<1x256xf32>
    %13 = vector.broadcast %12 : vector<1x256xf32> to vector<64x256xf32>
    %14 = arith.addf %11, %13 : vector<64x256xf32>
    %15 = arith.addf %14, %8 : vector<64x256xf32>
    %c0_17 = arith.constant 0 : index
    %c0_18 = arith.constant 0 : index
    %16 = vector.load %arg14[%c0_17, %c0_18] : memref<64x256xf32, #tpu.memory_space<vmem>>, vector<64x256xf32>
    tpu.vector_store %arg14[%c0_17, %c0_18], %15 {strides = array<i32>} : memref<64x256xf32, #tpu.memory_space<vmem>>, vector<64x256xf32>,
    %c0_19 = arith.constant 0 : index
    %c0_20 = arith.constant 0 : index
    %17 = vector.load %arg11[%c0_19, %c0_20] : memref<256x64xf32, #tpu.memory_space<vmem>>, vector<256x64xf32>
    %cst_21 = arith.constant dense<0.000000e+00> : vector<256x256xf32>
    %18 = tpu.matmul %17, %15, %cst_21 {dimension_numbers = #tpu.dot_dimension_numbers<[1], [0], [0], [1], [0, 0, 1, 1], [], []>} : vector<256x64xf32>, vector<64x256xf32>, vector<256x256xf32> -> vector<256x256xf32>
    %c0_22 = arith.constant 0 : index
    %c0_23 = arith.constant 0 : index
    %19 = vector.load %arg2[%c0_22, %c0_23] : memref<256x8xf32, #tpu.memory_space<vmem>>, vector<256x8xf32>
    %c0_24 = arith.constant 0 : index
    %c0_25 = arith.constant 0 : index
    %20 = vector.load %arg5[%c0_24, %c0_25] : memref<8x256xf32, #tpu.memory_space<vmem>>, vector<8x256xf32>
    %cst_26 = arith.constant dense<0.000000e+00> : vector<256x256xf32>
    %21 = tpu.matmul %19, %20, %cst_26 {dimension_numbers = #tpu.dot_dimension_numbers<[1], [0], [0], [1], [0, 0, 1, 1], [], []>} : vector<256x8xf32>, vector<8x256xf32>, vector<256x256xf32> -> vector<256x256xf32>
    %c0_27 = arith.constant 0 : index
    %c0_28 = arith.constant 0 : index
    %22 = vector.load %arg6[%c0_27, %c0_28] : memref<1x256xf32, #tpu.memory_space<vmem>>, vector<1x256xf32>
    %23 = vector.broadcast %22 : vector<1x256xf32> to vector<256x256xf32>
    %24 = arith.addf %21, %23 : vector<256x256xf32>
    %25 = arith.addf %24, %18 : vector<256x256xf32>
    %c0_29 = arith.constant 0 : index
    %c0_30 = arith.constant 0 : index
    %26 = vector.load %arg13[%c0_29, %c0_30] : memref<256x256xf32, #tpu.memory_space<vmem>>, vector<256x256xf32>
    tpu.vector_store %arg13[%c0_29, %c0_30], %25 {strides = array<i32>} : memref<256x256xf32, #tpu.memory_space<vmem>>, vector<256x256xf32>,
    return
  }
  func.func @transform_0(%arg0: i32, %arg1: i32) -> (i32, i32) {
    %c1_i32 = arith.constant 1 : i32
    %0 = arith.muli %arg0, %c1_i32 : i32
    %1 = arith.addi %0, %arg1 : i32
    %c0_i32 = arith.constant 0 : i32
    %c0_i32_0 = arith.constant 0 : i32
    return %1, %c0_i32 : i32, i32
  }
  func.func @transform_1(%arg0: i32, %arg1: i32) -> (i32, i32) {
    %c1_i32 = arith.constant 1 : i32
    %0 = arith.muli %arg0, %c1_i32 : i32
    %1 = arith.addi %0, %arg1 : i32
    %c0_i32 = arith.constant 0 : i32
    %c0_i32_0 = arith.constant 0 : i32
    return %1, %c0_i32 : i32, i32
  }
  func.func @transform_2(%arg0: i32, %arg1: i32) -> (i32, i32) {
    %c1_i32 = arith.constant 1 : i32
    %0 = arith.muli %arg0, %c1_i32 : i32
    %1 = arith.addi %0, %arg1 : i32
    %c0_i32 = arith.constant 0 : i32
    %c0_i32_0 = arith.constant 0 : i32
    return %1, %c0_i32 : i32, i32
  }
  func.func @transform_3(%arg0: i32, %arg1: i32) -> (i32, i32) {
    %c0_i32 = arith.constant 0 : i32
    %c0_i32_0 = arith.constant 0 : i32
    %c0_i32_1 = arith.constant 0 : i32
    return %c0_i32, %c0_i32_0 : i32, i32
  }
  func.func @transform_4(%arg0: i32, %arg1: i32) -> (i32, i32) {
    %c0_i32 = arith.constant 0 : i32
    %c0_i32_0 = arith.constant 0 : i32
    %c0_i32_1 = arith.constant 0 : i32
    return %c0_i32, %c0_i32_0 : i32, i32
  }
  func.func @transform_5(%arg0: i32, %arg1: i32) -> (i32, i32) {
    %c0_i32 = arith.constant 0 : i32
    %c0_i32_0 = arith.constant 0 : i32
    %c0_i32_1 = arith.constant 0 : i32
    return %c0_i32, %c0_i32_0 : i32, i32
  }
  func.func @transform_6(%arg0: i32, %arg1: i32) -> (i32, i32) {
    %c0_i32 = arith.constant 0 : i32
    %c0_i32_0 = arith.constant 0 : i32
    %c0_i32_1 = arith.constant 0 : i32
    return %c0_i32, %c0_i32_0 : i32, i32
  }
  func.func @transform_7(%arg0: i32, %arg1: i32) -> (i32, i32) {
    %c0_i32 = arith.constant 0 : i32
    %c0_i32_0 = arith.constant 0 : i32
    %c0_i32_1 = arith.constant 0 : i32
    return %c0_i32, %c0_i32_0 : i32, i32
  }
  func.func @transform_8(%arg0: i32, %arg1: i32) -> (i32, i32) {
    %c0_i32 = arith.constant 0 : i32
    %c0_i32_0 = arith.constant 0 : i32
    %c0_i32_1 = arith.constant 0 : i32
    return %c0_i32, %c0_i32_0 : i32, i32
  }
  func.func @transform_9(%arg0: i32, %arg1: i32) -> (i32, i32) {
    %c0_i32 = arith.constant 0 : i32
    %c0_i32_0 = arith.constant 0 : i32
    %c0_i32_1 = arith.constant 0 : i32
    return %c0_i32, %c0_i32_0 : i32, i32
  }
  func.func @transform_10(%arg0: i32, %arg1: i32) -> (i32, i32) {
    %c0_i32 = arith.constant 0 : i32
    %c0_i32_0 = arith.constant 0 : i32
    %c0_i32_1 = arith.constant 0 : i32
    return %c0_i32, %c0_i32_0 : i32, i32
  }
  func.func @transform_11(%arg0: i32, %arg1: i32) -> (i32, i32) {
    %c1_i32 = arith.constant 1 : i32
    %0 = arith.muli %arg0, %c1_i32 : i32
    %1 = arith.addi %0, %arg1 : i32
    %c0_i32 = arith.constant 0 : i32
    %c0_i32_0 = arith.constant 0 : i32
    return %1, %c0_i32 : i32, i32
  }
  func.func @transform_12(%arg0: i32, %arg1: i32) -> (i32, i32) {
    %c1_i32 = arith.constant 1 : i32
    %0 = arith.muli %arg0, %c1_i32 : i32
    %1 = arith.addi %0, %arg1 : i32
    %c0_i32 = arith.constant 0 : i32
    %c0_i32_0 = arith.constant 0 : i32
    return %1, %c0_i32 : i32, i32
  }
  func.func @transform_13(%arg0: i32, %arg1: i32) -> (i32, i32) {
    %c1_i32 = arith.constant 1 : i32
    %0 = arith.muli %arg0, %c1_i32 : i32
    %1 = arith.addi %0, %arg1 : i32
    %c0_i32 = arith.constant 0 : i32
    %c0_i32_0 = arith.constant 0 : i32
    return %1, %c0_i32 : i32, i32
  }
}

</mosaic_0001>

<llo_original>
// kernel: get_fpn_features.1
$region0: #{get_fpn_features.1}
  #allocation0 [shape = 'u32[]', space=smem, size = 0x4, offset = 0x4, fixed_abs, tag = 'smem constant byte address 0x4 - core index']
  #allocation1 [shape = 'u32[144,128]{1,0:T(1,128)}', space=vmem, size = 0x12000, scoped, tag = 'internal scratch']
  %s0 = inlined_call_operand.vmem [shape: f32[512,8], index: 0, kind: input, shape index: {}]
  %s1 = inlined_call_operand.vmem [shape: f32[128,16], index: 1, kind: input, shape index: {}]
  %s2 = inlined_call_operand.vmem [shape: f32[32,32], index: 2, kind: input, shape index: {}]
  %s3 = inlined_call_operand.vmem [shape: f32[8,256], index: 3, kind: input, shape index: {}]
  %s4 = inlined_call_operand.vmem [shape: f32[1,256], index: 4, kind: input, shape index: {}]
  %s5 = inlined_call_operand.vmem [shape: f32[16,256], index: 5, kind: input, shape index: {}]
  %s6 = inlined_call_operand.vmem [shape: f32[1,256], index: 6, kind: input, shape index: {}]
  %s7 = inlined_call_operand.vmem [shape: f32[32,256], index: 7, kind: input, shape index: {}]
  %s8 = inlined_call_operand.vmem [shape: f32[1,256], index: 8, kind: input, shape index: {}]
  %s9 = inlined_call_operand.vmem [shape: f32[256,64], index: 9, kind: input, shape index: {}]
  %s10 = inlined_call_operand.vmem [shape: f32[64,16], index: 10, kind: input, shape index: {}]
  %s11 = inlined_call_operand.hbm [shape: f32[512,256], index: 11, kind: output, shape index: {0}]
  %s12 = inlined_call_operand.hbm [shape: f32[128,256], index: 12, kind: output, shape index: {1}]
  %s13 = inlined_call_operand.vmem [shape: f32[32,256], index: 13, kind: output, shape index: {2}]
  %14 = xla_tuple %s11, %s12, %s13
  %s15 = sld [smem:[#allocation0]]
  $region93: #{get_fpn_features.1} parent=0
    _
  %s17 = ssub.s32 1, %s15
  %s18 = scalar_select 0, %s17, %s15
  $region1: #{get_fpn_features.1} parent=0
    #allocation2 [shape = 'u8[524288]{0}', space=vmem, size = 0x80000, scoped, tag = 'output window, operand 0']
    #allocation3 [shape = 's32[2]{0}', space=sflag, size = 0x8, scoped, tag = 'scoped memory for get_fpn_features.1']
    #allocation4 [shape = 'u8[131072]{0}', space=vmem, size = 0x20000, scoped, tag = 'output window, operand 1']
    #allocation5 [shape = 's32[2]{0}', space=sflag, size = 0x8, scoped, tag = 'scoped memory for get_fpn_features.1']
    %19 = vsyncpa [#allocation3], 0
    %s20 = scalar_lea.sflag [#allocation3], 1
    %21 = vsyncpa %s20, 0
    %22 = vsyncpa [#allocation5], 0
    %s23 = scalar_lea.sflag [#allocation5], 1
    %24 = vsyncpa %s23, 0
    loop: start=0, step=1, limit=4
    $region2: #{get_fpn_features.1} parent=1 // loop_pre_header
      _
    $region3: #{get_fpn_features.1} parent=1 // loop_header
      %s26 = sphi 0, %s30
      %p27 = scmp.ge.s32.totalorder %s26, 4
      %s33 = sphi 0, %s45
      %s34 = sphi 0, %s41
      %s35 = sphi 0, %s33
      %s36 = sphi 0, %s34
      %s37 = sphi 0, %s35
      %s38 = sphi 0, %s36
      %s50 = sphi 0, %s52
      %s53 = sphi 0, %s50
      %s54 = sphi 0, %s53
      %s70 = sphi 0, %s54
      %s78 = sphi 0, %s80
      %s81 = sphi 0, %s78
      %s82 = sphi 0, %s81
      %s98 = sphi 0, %s82
      %s106 = sphi 0, %s108
      %s109 = sphi 0, %s106
      %s110 = sphi 0, %s109
      %s126 = sphi 0, %s110
      %s130 = sphi 0, %s130
      %s132 = sphi 0, %s130
      %s133 = sphi 0, %s132
      %s147 = sphi 0, %s133
      %s151 = sphi 0, %s151
      %s153 = sphi 0, %s151
      %s154 = sphi 0, %s153
      %s168 = sphi 0, %s154
      %s172 = sphi 0, %s172
      %s174 = sphi 0, %s172
      %s175 = sphi 0, %s174
      %s189 = sphi 0, %s175
      %s193 = sphi 0, %s193
      %s195 = sphi 0, %s193
      %s196 = sphi 0, %s195
      %s210 = sphi 0, %s196
      %s214 = sphi 0, %s214
      %s216 = sphi 0, %s214
      %s217 = sphi 0, %s216
      %s231 = sphi 0, %s217
      %s235 = sphi 0, %s235
      %s237 = sphi 0, %s235
      %s238 = sphi 0, %s237
      %s252 = sphi 0, %s238
      %s256 = sphi 0, %s256
      %s258 = sphi 0, %s256
      %s259 = sphi 0, %s258
      %s273 = sphi 0, %s259
      %s277 = sphi 0, %s277
      %s279 = sphi 0, %s277
      %s280 = sphi 0, %s279
      %s294 = sphi 0, %s280
      %s302 = sphi 0, %s304
      %s305 = sphi 0, %s302
      %s306 = sphi 0, %s305
      %s322 = sphi 0, %s306
      %s330 = sphi 0, %s332
      %s333 = sphi 0, %s330
      %s334 = sphi 0, %s333
      %s350 = sphi 0, %s334
      %s358 = sphi 0, %s360
      %s361 = sphi 0, %s358
      %s362 = sphi 0, %s361
      %s378 = sphi 0, %s362
    $region4: #{get_fpn_features.1} parent=1 // loop_header_branch
      %29 = sbr.rel (%p27) target = $region8
    $region5: #{get_fpn_features.1} parent=1 // loop_body
      %s31 = ssub.s32 %s26, 1
      %s32 = ssub.s32 %s26, 2
      %s39 = sadd.s32 1, %s34
      %p40 = scmp.ge.s32.totalorder %s39, 1
      %s41 = scalar_select %p40, 0, %s39
      %s42 = sadd.s32 1, %s33
      %s43 = scalar_select %p40, %s42, %s33
      %p44 = scmp.ge.s32.totalorder %s43, 2
      %s45 = scalar_select %p44, 0, %s43
      %s46 = sadd.s32 %s33, %s34
      %s47 = sadd.s32 %s45, %s41
      %s48 = ssub.s32 %s46, %s47
      %p49 = scmp.eq.s32.totalorder %s48, 0
      %s51 = sadd.s32 %s50, 1
      %s52 = scalar_select %p49, %s50, %s51
      %p55 = pneg %p49
      %p56 = scmp.eq.s32.totalorder %s26, 1
      %p57 = por %p55, %p56
      %p58 = scmp.ne.s32.totalorder %s50, %s53
      %p59 = scmp.eq.s32.totalorder %s26, 0
      %p60 = por %p58, %p59
      %p61 = scmp.ne.s32.totalorder %s50, %s53
      %p62 = scmp.eq.s32.totalorder %s31, 1
      %p63 = por %p61, %p62
      %p64 = scmp.ne.s32.totalorder %s53, %s54
      %p65 = scmp.eq.s32.totalorder %s31, 0
      %p66 = por %p64, %p65
      %p67 = scmp.ne.s32.totalorder %s53, %s54
      %p68 = scmp.eq.s32.totalorder %s32, 1
      %p69 = por %p67, %p68
      %p71 = scmp.ne.s32.totalorder %s54, %s70
      %p72 = scmp.eq.s32.totalorder %s32, 0
      %p73 = por %p71, %p72
      %s74 = sadd.s32 %s33, %s34
      %s75 = sadd.s32 %s45, %s41
      %s76 = ssub.s32 %s74, %s75
      %p77 = scmp.eq.s32.totalorder %s76, 0
      %s79 = sadd.s32 %s78, 1
      %s80 = scalar_select %p77, %s78, %s79
      %p83 = pneg %p77
      %p84 = scmp.eq.s32.totalorder %s26, 1
      %p85 = por %p83, %p84
      %p86 = scmp.ne.s32.totalorder %s78, %s81
      %p87 = scmp.eq.s32.totalorder %s26, 0
      %p88 = por %p86, %p87
      %p89 = scmp.ne.s32.totalorder %s78, %s81
      %p90 = scmp.eq.s32.totalorder %s31, 1
      %p91 = por %p89, %p90
      %p92 = scmp.ne.s32.totalorder %s81, %s82
      %p93 = scmp.eq.s32.totalorder %s31, 0
      %p94 = por %p92, %p93
      %p95 = scmp.ne.s32.totalorder %s81, %s82
      %p96 = scmp.eq.s32.totalorder %s32, 1
      %p97 = por %p95, %p96
      %p99 = scmp.ne.s32.totalorder %s82, %s98
      %p100 = scmp.eq.s32.totalorder %s32, 0
      %p101 = por %p99, %p100
      %s102 = sadd.s32 %s33, %s34
      %s103 = sadd.s32 %s45, %s41
      %s104 = ssub.s32 %s102, %s103
      %p105 = scmp.eq.s32.totalorder %s104, 0
      %s107 = sadd.s32 %s106, 1
      %s108 = scalar_select %p105, %s106, %s107
      %p111 = pneg %p105
      %p112 = scmp.eq.s32.totalorder %s26, 1
      %p113 = por %p111, %p112
      %p114 = scmp.ne.s32.totalorder %s106, %s109
      %p115 = scmp.eq.s32.totalorder %s26, 0
      %p116 = por %p114, %p115
      %p117 = scmp.ne.s32.totalorder %s106, %s109
      %p118 = scmp.eq.s32.totalorder %s31, 1
      %p119 = por %p117, %p118
      %p120 = scmp.ne.s32.totalorder %s109, %s110
      %p121 = scmp.eq.s32.totalorder %s31, 0
      %p122 = por %p120, %p121
      %p123 = scmp.ne.s32.totalorder %s109, %s110
      %p124 = scmp.eq.s32.totalorder %s32, 1
      %p125 = por %p123, %p124
      %p127 = scmp.ne.s32.totalorder %s110, %s126
      %p128 = scmp.eq.s32.totalorder %s32, 0
      %p129 = por %p127, %p128
      %s131 = sadd.s32 %s130, 1
      %p134 = scmp.eq.s32.totalorder %s26, 1
      %p135 = scmp.ne.s32.totalorder %s130, %s132
      %p136 = scmp.eq.s32.totalorder %s26, 0
      %p137 = por %p135, %p136
      %p138 = scmp.ne.s32.totalorder %s130, %s132
      %p139 = scmp.eq.s32.totalorder %s31, 1
      %p140 = por %p138, %p139
      %p141 = scmp.ne.s32.totalorder %s132, %s133
      %p142 = scmp.eq.s32.totalorder %s31, 0
      %p143 = por %p141, %p142
      %p144 = scmp.ne.s32.totalorder %s132, %s133
      %p145 = scmp.eq.s32.totalorder %s32, 1
      %p146 = por %p144, %p145
      %p148 = scmp.ne.s32.totalorder %s133, %s147
      %p149 = scmp.eq.s32.totalorder %s32, 0
      %p150 = por %p148, %p149
      %s152 = sadd.s32 %s151, 1
      %p155 = scmp.eq.s32.totalorder %s26, 1
      %p156 = scmp.ne.s32.totalorder %s151, %s153
      %p157 = scmp.eq.s32.totalorder %s26, 0
      %p158 = por %p156, %p157
      %p159 = scmp.ne.s32.totalorder %s151, %s153
      %p160 = scmp.eq.s32.totalorder %s31, 1
      %p161 = por %p159, %p160
      %p162 = scmp.ne.s32.totalorder %s153, %s154
      %p163 = scmp.eq.s32.totalorder %s31, 0
      %p164 = por %p162, %p163
      %p165 = scmp.ne.s32.totalorder %s153, %s154
      %p166 = scmp.eq.s32.totalorder %s32, 1
      %p167 = por %p165, %p166
      %p169 = scmp.ne.s32.totalorder %s154, %s168
      %p170 = scmp.eq.s32.totalorder %s32, 0
      %p171 = por %p169, %p170
      %s173 = sadd.s32 %s172, 1
      %p176 = scmp.eq.s32.totalorder %s26, 1
      %p177 = scmp.ne.s32.totalorder %s172, %s174
      %p178 = scmp.eq.s32.totalorder %s26, 0
      %p179 = por %p177, %p178
      %p180 = scmp.ne.s32.totalorder %s172, %s174
      %p181 = scmp.eq.s32.totalorder %s31, 1
      %p182 = por %p180, %p181
      %p183 = scmp.ne.s32.totalorder %s174, %s175
      %p184 = scmp.eq.s32.totalorder %s31, 0
      %p185 = por %p183, %p184
      %p186 = scmp.ne.s32.totalorder %s174, %s175
      %p187 = scmp.eq.s32.totalorder %s32, 1
      %p188 = por %p186, %p187
      %p190 = scmp.ne.s32.totalorder %s175, %s189
      %p191 = scmp.eq.s32.totalorder %s32, 0
      %p192 = por %p190, %p191
      %s194 = sadd.s32 %s193, 1
      %p197 = scmp.eq.s32.totalorder %s26, 1
      %p198 = scmp.ne.s32.totalorder %s193, %s195
      %p199 = scmp.eq.s32.totalorder %s26, 0
      %p200 = por %p198, %p199
      %p201 = scmp.ne.s32.totalorder %s193, %s195
      %p202 = scmp.eq.s32.totalorder %s31, 1
      %p203 = por %p201, %p202
      %p204 = scmp.ne.s32.totalorder %s195, %s196
      %p205 = scmp.eq.s32.totalorder %s31, 0
      %p206 = por %p204, %p205
      %p207 = scmp.ne.s32.totalorder %s195, %s196
      %p208 = scmp.eq.s32.totalorder %s32, 1
      %p209 = por %p207, %p208
      %p211 = scmp.ne.s32.totalorder %s196, %s210
      %p212 = scmp.eq.s32.totalorder %s32, 0
      %p213 = por %p211, %p212
      %s215 = sadd.s32 %s214, 1
      %p218 = scmp.eq.s32.totalorder %s26, 1
      %p219 = scmp.ne.s32.totalorder %s214, %s216
      %p220 = scmp.eq.s32.totalorder %s26, 0
      %p221 = por %p219, %p220
      %p222 = scmp.ne.s32.totalorder %s214, %s216
      %p223 = scmp.eq.s32.totalorder %s31, 1
      %p224 = por %p222, %p223
      %p225 = scmp.ne.s32.totalorder %s216, %s217
      %p226 = scmp.eq.s32.totalorder %s31, 0
      %p227 = por %p225, %p226
      %p228 = scmp.ne.s32.totalorder %s216, %s217
      %p229 = scmp.eq.s32.totalorder %s32, 1
      %p230 = por %p228, %p229
      %p232 = scmp.ne.s32.totalorder %s217, %s231
      %p233 = scmp.eq.s32.totalorder %s32, 0
      %p234 = por %p232, %p233
      %s236 = sadd.s32 %s235, 1
      %p239 = scmp.eq.s32.totalorder %s26, 1
      %p240 = scmp.ne.s32.totalorder %s235, %s237
      %p241 = scmp.eq.s32.totalorder %s26, 0
      %p242 = por %p240, %p241
      %p243 = scmp.ne.s32.totalorder %s235, %s237
      %p244 = scmp.eq.s32.totalorder %s31, 1
      %p245 = por %p243, %p244
      %p246 = scmp.ne.s32.totalorder %s237, %s238
      %p247 = scmp.eq.s32.totalorder %s31, 0
      %p248 = por %p246, %p247
      %p249 = scmp.ne.s32.totalorder %s237, %s238
      %p250 = scmp.eq.s32.totalorder %s32, 1
      %p251 = por %p249, %p250
      %p253 = scmp.ne.s32.totalorder %s238, %s252
      %p254 = scmp.eq.s32.totalorder %s32, 0
      %p255 = por %p253, %p254
      %s257 = sadd.s32 %s256, 1
      %p260 = scmp.eq.s32.totalorder %s26, 1
      %p261 = scmp.ne.s32.totalorder %s256, %s258
      %p262 = scmp.eq.s32.totalorder %s26, 0
      %p263 = por %p261, %p262
      %p264 = scmp.ne.s32.totalorder %s256, %s258
      %p265 = scmp.eq.s32.totalorder %s31, 1
      %p266 = por %p264, %p265
      %p267 = scmp.ne.s32.totalorder %s258, %s259
      %p268 = scmp.eq.s32.totalorder %s31, 0
      %p269 = por %p267, %p268
      %p270 = scmp.ne.s32.totalorder %s258, %s259
      %p271 = scmp.eq.s32.totalorder %s32, 1
      %p272 = por %p270, %p271
      %p274 = scmp.ne.s32.totalorder %s259, %s273
      %p275 = scmp.eq.s32.totalorder %s32, 0
      %p276 = por %p274, %p275
      %s278 = sadd.s32 %s277, 1
      %p281 = scmp.eq.s32.totalorder %s26, 1
      %p282 = scmp.ne.s32.totalorder %s277, %s279
      %p283 = scmp.eq.s32.totalorder %s26, 0
      %p284 = por %p282, %p283
      %p285 = scmp.ne.s32.totalorder %s277, %s279
      %p286 = scmp.eq.s32.totalorder %s31, 1
      %p287 = por %p285, %p286
      %p288 = scmp.ne.s32.totalorder %s279, %s280
      %p289 = scmp.eq.s32.totalorder %s31, 0
      %p290 = por %p288, %p289
      %p291 = scmp.ne.s32.totalorder %s279, %s280
      %p292 = scmp.eq.s32.totalorder %s32, 1
      %p293 = por %p291, %p292
      %p295 = scmp.ne.s32.totalorder %s280, %s294
      %p296 = scmp.eq.s32.totalorder %s32, 0
      %p297 = por %p295, %p296
      %s298 = sadd.s32 %s33, %s34
      %s299 = sadd.s32 %s45, %s41
      %s300 = ssub.s32 %s298, %s299
      %p301 = scmp.eq.s32.totalorder %s300, 0
      %s303 = sadd.s32 %s302, 1
      %s304 = scalar_select %p301, %s302, %s303
      %p307 = pneg %p301
      %p308 = scmp.eq.s32.totalorder %s26, 1
      %p309 = por %p307, %p308
      %p310 = scmp.ne.s32.totalorder %s302, %s305
      %p311 = scmp.eq.s32.totalorder %s26, 0
      %p312 = por %p310, %p311
      %p313 = scmp.ne.s32.totalorder %s302, %s305
      %p314 = scmp.eq.s32.totalorder %s31, 1
      %p315 = por %p313, %p314
      %p316 = scmp.ne.s32.totalorder %s305, %s306
      %p317 = scmp.eq.s32.totalorder %s31, 0
      %p318 = por %p316, %p317
      %p319 = scmp.ne.s32.totalorder %s305, %s306
      %p320 = scmp.eq.s32.totalorder %s32, 1
      %p321 = por %p319, %p320
      %p323 = scmp.ne.s32.totalorder %s306, %s322
      %p324 = scmp.eq.s32.totalorder %s32, 0
      %p325 = por %p323, %p324
      %s326 = sadd.s32 %s33, %s34
      %s327 = sadd.s32 %s45, %s41
      %s328 = ssub.s32 %s326, %s327
      %p329 = scmp.eq.s32.totalorder %s328, 0
      %s331 = sadd.s32 %s330, 1
      %s332 = scalar_select %p329, %s330, %s331
      %p335 = pneg %p329
      %p336 = scmp.eq.s32.totalorder %s26, 1
      %p337 = por %p335, %p336
      %p338 = scmp.ne.s32.totalorder %s330, %s333
      %p339 = scmp.eq.s32.totalorder %s26, 0
      %p340 = por %p338, %p339
      %p341 = scmp.ne.s32.totalorder %s330, %s333
      %p342 = scmp.eq.s32.totalorder %s31, 1
      %p343 = por %p341, %p342
      %p344 = scmp.ne.s32.totalorder %s333, %s334
      %p345 = scmp.eq.s32.totalorder %s31, 0
      %p346 = por %p344, %p345
      %p347 = scmp.ne.s32.totalorder %s333, %s334
      %p348 = scmp.eq.s32.totalorder %s32, 1
      %p349 = por %p347, %p348
      %p351 = scmp.ne.s32.totalorder %s334, %s350
      %p352 = scmp.eq.s32.totalorder %s32, 0
      %p353 = por %p351, %p352
      %s354 = sadd.s32 %s33, %s34
      %s355 = sadd.s32 %s45, %s41
      %s356 = ssub.s32 %s354, %s355
      %p357 = scmp.eq.s32.totalorder %s356, 0
      %s359 = sadd.s32 %s358, 1
      %s360 = scalar_select %p357, %s358, %s359
      %p363 = pneg %p357
      %p364 = scmp.eq.s32.totalorder %s26, 1
      %p365 = por %p363, %p364
      %p366 = scmp.ne.s32.totalorder %s358, %s361
      %p367 = scmp.eq.s32.totalorder %s26, 0
      %p368 = por %p366, %p367
      %p369 = scmp.ne.s32.totalorder %s358, %s361
      %p370 = scmp.eq.s32.totalorder %s31, 1
      %p371 = por %p369, %p370
      %p372 = scmp.ne.s32.totalorder %s361, %s362
      %p373 = scmp.eq.s32.totalorder %s31, 0
      %p374 = por %p372, %p373
      %p375 = scmp.ne.s32.totalorder %s361, %s362
      %p376 = scmp.eq.s32.totalorder %s32, 1
      %p377 = por %p375, %p376
      %p379 = scmp.ne.s32.totalorder %s362, %s378
      %p380 = scmp.eq.s32.totalorder %s32, 0
      %p381 = por %p379, %p380
      %p382 = scmp.le.s32.totalorder 1, %s26
      %p383 = scmp.lt.s32.totalorder %s26, 3
      %p384 = pnand %p382, %p383
      %p385 = pneg %p384
      // Predicated region
      $region9: #{get_fpn_features.1} parent=5 // pred_check
        _
      $region10: #{get_fpn_features.1} parent=5 // pred_check_branch
        %387 = sbr.rel (%p384) target = $region12
      $region11: #{get_fpn_features.1} parent=5 // pred_region
        %s388 = ssub.s32 %s26, 1
        // Predicated region
        $region13: #{get_fpn_features.1} parent=11 // pred_check
          %p389 = pneg %p143
        $region14: #{get_fpn_features.1} parent=11 // pred_check_branch
          %391 = sbr.rel (%p389) target = $region16
        $region15: #{get_fpn_features.1} parent=11 // pred_region
          _
        $region16: #{get_fpn_features.1} parent=11 // pred_fallthru
          _
        // Predicated region
        $region17: #{get_fpn_features.1} parent=11 // pred_check
          %p392 = pneg %p164
        $region18: #{get_fpn_features.1} parent=11 // pred_check_branch
          %394 = sbr.rel (%p392) target = $region20
        $region19: #{get_fpn_features.1} parent=11 // pred_region
          _
        $region20: #{get_fpn_features.1} parent=11 // pred_fallthru
          _
        // Predicated region
        $region21: #{get_fpn_features.1} parent=11 // pred_check
          %p395 = pneg %p185
        $region22: #{get_fpn_features.1} parent=11 // pred_check_branch
          %397 = sbr.rel (%p395) target = $region24
        $region23: #{get_fpn_features.1} parent=11 // pred_region
          _
        $region24: #{get_fpn_features.1} parent=11 // pred_fallthru
          _
        // Predicated region
        $region25: #{get_fpn_features.1} parent=11 // pred_check
          %p398 = pneg %p206
        $region26: #{get_fpn_features.1} parent=11 // pred_check_branch
          %400 = sbr.rel (%p398) target = $region28
        $region27: #{get_fpn_features.1} parent=11 // pred_region
          _
        $region28: #{get_fpn_features.1} parent=11 // pred_fallthru
          _
        // Predicated region
        $region29: #{get_fpn_features.1} parent=11 // pred_check
          %p401 = pneg %p227
        $region30: #{get_fpn_features.1} parent=11 // pred_check_branch
          %403 = sbr.rel (%p401) target = $region32
        $region31: #{get_fpn_features.1} parent=11 // pred_region
          _
        $region32: #{get_fpn_features.1} parent=11 // pred_fallthru
          _
        // Predicated region
        $region33: #{get_fpn_features.1} parent=11 // pred_check
          %p404 = pneg %p248
        $region34: #{get_fpn_features.1} parent=11 // pred_check_branch
          %406 = sbr.rel (%p404) target = $region36
        $region35: #{get_fpn_features.1} parent=11 // pred_region
          _
        $region36: #{get_fpn_features.1} parent=11 // pred_fallthru
          _
        // Predicated region
        $region37: #{get_fpn_features.1} parent=11 // pred_check
          %p407 = pneg %p269
        $region38: #{get_fpn_features.1} parent=11 // pred_check_branch
          %409 = sbr.rel (%p407) target = $region40
        $region39: #{get_fpn_features.1} parent=11 // pred_region
          _
        $region40: #{get_fpn_features.1} parent=11 // pred_fallthru
          _
        // Predicated region
        $region41: #{get_fpn_features.1} parent=11 // pred_check
          %p410 = pneg %p290
        $region42: #{get_fpn_features.1} parent=11 // pred_check_branch
          %412 = sbr.rel (%p410) target = $region44
        $region43: #{get_fpn_features.1} parent=11 // pred_region
          _
        $region44: #{get_fpn_features.1} parent=11 // pred_fallthru
          _
      $region12: #{get_fpn_features.1} parent=5 // pred_fallthru
        _
      %p413 = scmp.lt.s32.totalorder %s26, 2
      // Predicated region
      $region45: #{get_fpn_features.1} parent=5 // pred_check
        %p414 = pneg %p413
      $region46: #{get_fpn_features.1} parent=5 // pred_check_branch
        %416 = sbr.rel (%p414) target = $region48
      $region47: #{get_fpn_features.1} parent=5 // pred_region
        // Predicated region
        $region49: #{get_fpn_features.1} parent=47 // pred_check
          %p417 = pneg %p60
        $region50: #{get_fpn_features.1} parent=47 // pred_check_branch
          %419 = sbr.rel (%p417) target = $region52
        $region51: #{get_fpn_features.1} parent=47 // pred_region
          %s420 = sadd.s32 %s33, %s34
          %s421 = smul.u32 32, %s420
          %p422 = scmp.lt.s32.totalorder %s421, 63
          %s423 = scalar_select %p422, %s421, 63
          %s424 = smul.addr %s423, 8
          %s425 = scalar_lea.vmem %s0, %s424
          %s426 = sadd.s32 %s33, %s34
          %s427 = smul.u32 32, %s426
        $region52: #{get_fpn_features.1} parent=47 // pred_fallthru
          _
        // Predicated region
        $region53: #{get_fpn_features.1} parent=47 // pred_check
          %p428 = pneg %p88
        $region54: #{get_fpn_features.1} parent=47 // pred_check_branch
          %430 = sbr.rel (%p428) target = $region56
        $region55: #{get_fpn_features.1} parent=47 // pred_region
          %s431 = sadd.s32 %s33, %s34
          %s432 = smul.u32 8, %s431
          %p433 = scmp.lt.s32.totalorder %s432, 15
          %s434 = scalar_select %p433, %s432, 15
          %s435 = smul.addr %s434, 8
          %s436 = scalar_lea.vmem %s1, %s435
          %s437 = sadd.s32 %s33, %s34
          %s438 = smul.u32 8, %s437
        $region56: #{get_fpn_features.1} parent=47 // pred_fallthru
          _
        // Predicated region
        $region57: #{get_fpn_features.1} parent=47 // pred_check
          %p439 = pneg %p116
        $region58: #{get_fpn_features.1} parent=47 // pred_check_branch
          %441 = sbr.rel (%p439) target = $region60
        $region59: #{get_fpn_features.1} parent=47 // pred_region
          %s442 = sadd.s32 %s33, %s34
          %s443 = smul.u32 2, %s442
          %p444 = scmp.lt.s32.totalorder %s443, 3
          %s445 = scalar_select %p444, %s443, 3
          %s446 = smul.addr %s445, 8
          %s447 = scalar_lea.vmem %s2, %s446
          %s448 = sadd.s32 %s33, %s34
          %s449 = smul.u32 2, %s448
        $region60: #{get_fpn_features.1} parent=47 // pred_fallthru
          _
      $region48: #{get_fpn_features.1} parent=5 // pred_fallthru
        _
      %p450 = scmp.le.s32.totalorder 1, %s26
      %p451 = scmp.lt.s32.totalorder %s26, 3
      %p452 = pnand %p450, %p451
      %p453 = pneg %p452
      // Predicated region
      $region61: #{get_fpn_features.1} parent=5 // pred_check
        _
      $region62: #{get_fpn_features.1} parent=5 // pred_check_branch
        %455 = sbr.rel (%p452) target = $region64
      $region63: #{get_fpn_features.1} parent=5 // pred_region
        %s456 = ssub.s32 %s26, 1
        %s457 = sadd.s32 %s35, %s36
        %s458 = smul.u32 32, %s457
        %p459 = scmp.lt.s32.totalorder %s458, 63
        %s460 = scalar_select %p459, %s458, 63
        %s461 = smul.addr %s460, 8
        %s462 = scalar_lea.vmem %s0, %s461
        %p463 = pneg %p66
        %p464 = pneg %p63
        %s465 = sadd.s32 %s35, %s36
        %s466 = smul.u32 8, %s465
        %p467 = scmp.lt.s32.totalorder %s466, 15
        %s468 = scalar_select %p467, %s466, 15
        %s469 = smul.addr %s468, 8
        %s470 = scalar_lea.vmem %s1, %s469
        %p471 = pneg %p94
        %p472 = pneg %p91
        %s473 = sadd.s32 %s35, %s36
        %s474 = smul.u32 2, %s473
        %p475 = scmp.lt.s32.totalorder %s474, 3
        %s476 = scalar_select %p475, %s474, 3
        %s477 = smul.addr %s476, 8
        %s478 = scalar_lea.vmem %s2, %s477
        %p479 = pneg %p122
        %p480 = pneg %p119
        %p481 = pneg %p143
        %p482 = pneg %p140
        %p483 = pneg %p164
        %p484 = pneg %p161
        %p485 = pneg %p185
        %p486 = pneg %p182
        %p487 = pneg %p206
        %p488 = pneg %p203
        %p489 = pneg %p227
        %p490 = pneg %p224
        %p491 = pneg %p248
        %p492 = pneg %p245
        %p493 = pneg %p269
        %p494 = pneg %p266
        %p495 = pneg %p290
        %p496 = pneg %p287
        %p497 = pneg %p318
        %p498 = pneg %p315
        %s499 = sand.u32 %s305, 1
        %s500 = scalar_lea.sflag [#allocation3], %s499
        %s501 = sand.u32 %s305, 1
        %s502 = smul.addr %s501, 512
        %s503 = scalar_lea.vmem [#allocation2], %s502
        %p504 = pneg %p346
        %p505 = pneg %p343
        %s506 = sand.u32 %s333, 1
        %s507 = scalar_lea.sflag [#allocation5], %s506
        %s508 = sand.u32 %s333, 1
        %s509 = smul.addr %s508, 128
        %s510 = scalar_lea.vmem [#allocation4], %s509
        %p511 = pneg %p374
        %p512 = pneg %p371
        %s513 = sadd.s32 %s35, %s36
        %s514 = smul.u32 2, %s513
        %p515 = scmp.lt.s32.totalorder %s514, 3
        %s516 = scalar_select %p515, %s514, 3
        %s517 = smul.addr %s516, 2
        %s518 = smul.addr %s517, 8
        %s519 = scalar_lea.vmem %s13, %s518
        %s520 = sadd.s32 %s35, %s36
        %s521 = smul.u32 32, %s520
        %p522 = scmp.lt.s32.totalorder %s521, 63
        %s523 = scalar_select %p522, %s521, 63
        %s524 = smul.addr %s523, 8
        %s525 = scalar_lea.vmem %s0, %s524
        %s526 = sadd.s32 %s35, %s36
        %s527 = smul.u32 32, %s526
        %s528 = sadd.s32 %s35, %s36
        %s529 = smul.u32 8, %s528
        %p530 = scmp.lt.s32.totalorder %s529, 15
        %s531 = scalar_select %p530, %s529, 15
        %s532 = smul.addr %s531, 8
        %s533 = scalar_lea.vmem %s1, %s532
        %s534 = sadd.s32 %s35, %s36
        %s535 = smul.u32 8, %s534
        %s536 = sadd.s32 %s35, %s36
        %s537 = smul.u32 2, %s536
        %p538 = scmp.lt.s32.totalorder %s537, 3
        %s539 = scalar_select %p538, %s537, 3
        %s540 = smul.addr %s539, 8
        %s541 = scalar_lea.vmem %s2, %s540
        %s542 = sadd.s32 %s35, %s36
        %s543 = smul.u32 2, %s542
        %s544 = sadd.s32 %s35, %s36
        %s545 = smul.u32 32, %s544
        %s546 = sadd.s32 %s35, %s36
        %s547 = smul.u32 8, %s546
        %s548 = sadd.s32 %s35, %s36
        %s549 = smul.u32 2, %s548
        %p550 = scmp.lt.s32.totalorder %s549, 3
        %s551 = scalar_select %p550, %s549, 3
        %s552 = smul.addr %s551, 2
        %s553 = smul.addr %s552, 8
        %s554 = scalar_lea.vmem %s13, %s553
        %s555 = sadd.s32 %s35, %s36
        %s556 = smul.u32 2, %s555
        %v557 = vld [vmem:[%s541] sm:$0xff]
        %v558 = vld [vmem:[%s541 + $0x8] sm:$0xff]
        %v559 = vld [vmem:[%s7] sm:$0xff]
        %v560 = vld [vmem:[%s7 + $0x8] sm:$0xff]
        %v561 = vld [vmem:[%s7 + $0x10] sm:$0xff]
        %v562 = vld [vmem:[%s7 + $0x18] sm:$0xff]
        %v563 = vld [vmem:[%s7 + $0x20] sm:$0xff]
        %v564 = vld [vmem:[%s7 + $0x28] sm:$0xff]
        %v565 = vld [vmem:[%s7 + $0x30] sm:$0xff]
        %v566 = vld [vmem:[%s7 + $0x38] sm:$0xff]
        %v567 = vld [vmem:[%s8] sm:$0x3]
        %v569 = vlaneseq
        %v570 = vshrl.u32 %v569, 7
        %v571 = vsub.s32 0, %v570
        %v572 = vrot.slane %v567, %v571
        %v573 = vlaneseq
        %v574 = vshrl.u32 %v573, 7
        %v575 = vsub.s32 1, %v574
        %v576 = vrot.slane %v567, %v575
        %vm579 = vcmask 261120
        %v581 = vsel %vm579, %v557, 0
        %v584 = vsel %vm579, %v558, 0
        %586 = vmatprep.subr.mxu0 %v560
        %587 = vmatpush1.msra.mxu0 %v559
        %588 = vmatprep.subr.mxu0 %v562
        %589 = vmatpush1.msra.mxu0 %v561
        %590 = vmatprep.subr.mxu0 %v564
        %591 = vmatpush1.msra.mxu0 %v563
        %592 = vmatprep.subr.mxu0 %v566
        %593 = vmatpush1.msra.mxu0 %v565
        %594 = vmatprep.subr.mxu0 0.0
        %595 = vmatpush1.msra.mxu0 0.0
        %596 = vmatprep.subr.mxu0 0.0
        %597 = vmatpush1.msra.mxu0 0.0
        %598 = vmatprep.subr.mxu0 0.0
        %599 = vmatpush1.msra.mxu0 0.0
        %600 = vmatprep.subr.mxu0 0.0
        %601 = vmatpush1.msra.mxu0 0.0
        %602 = vmatprep.subr.mxu0 0.0
        %603 = vmatpush1.msra.mxu0 0.0
        %604 = vmatprep.subr.mxu0 0.0
        %605 = vmatpush1.msra.mxu0 0.0
        %606 = vmatprep.subr.mxu0 0.0
        %607 = vmatpush1.msra.mxu0 0.0
        %608 = vmatprep.subr.mxu0 0.0
        %609 = vmatpush1.msra.mxu0 0.0
        %610 = vmatprep.subr.mxu0 0.0
        %611 = vmatpush1.msra.mxu0 0.0
        %612 = vmatprep.subr.mxu0 0.0
        %613 = vmatpush1.msra.mxu0 0.0
        %614 = vmatprep.subr.mxu0 0.0
        %615 = vmatpush1.msra.mxu0 0.0
        %616 = vmatprep.subr.mxu0 0.0
        %617 = vmatpush1.msra.mxu0 0.0
        %618 = vmatprep.subr.mxu0 0.0
        %619 = vmatpush1.msra.mxu0 0.0
        %620 = vmatprep.subr.mxu0 0.0
        %621 = vmatpush1.msra.mxu0 0.0
        %622 = vmatprep.subr.mxu0 0.0
        %623 = vmatpush1.msra.mxu0 0.0
        %624 = vmatprep.subr.mxu0 0.0
        %625 = vmatpush1.msra.mxu0 0.0
        %626 = vmatprep.subr.mxu0 0.0
        %627 = vmatpush1.msra.mxu0 0.0
        %628 = vmatprep.subr.mxu0 0.0
        %629 = vmatpush1.msra.mxu0 0.0
        %630 = vmatprep.subr.mxu0 0.0
        %631 = vmatpush1.msra.mxu0 0.0
        %632 = vmatprep.subr.mxu0 0.0
        %633 = vmatpush1.msra.mxu0 0.0
        %634 = vmatprep.subr.mxu0 0.0
        %635 = vmatpush1.msra.mxu0 0.0
        %636 = vmatprep.subr.mxu0 0.0
        %637 = vmatpush1.msra.mxu0 0.0
        %638 = vmatprep.subr.mxu0 0.0
        %639 = vmatpush1.msra.mxu0 0.0
        %640 = vmatprep.subr.mxu0 0.0
        %641 = vmatpush1.msra.mxu0 0.0
        %642 = vmatprep.subr.mxu0 0.0
        %643 = vmatpush1.msra.mxu0 0.0
        %644 = vmatprep.subr.mxu0 0.0
        %645 = vmatpush1.msra.mxu0 0.0
        %646 = vmatprep.subr.mxu0 0.0
        %647 = vmatpush1.msra.mxu0 0.0
        %648 = vmatprep.subr.mxu0 0.0
        %649 = vmatpush1.msra.mxu0 0.0
        %650 = vmatprep.mubr.f32.mxu0 0.0
        %651 = vmatmul.mubr.f32.gmra.mrb[0].mxu0 %v581
        %v652 = vpop.f32.mrb[0].mxu0
        %v653 = vadd.f32 %v572, %v652
        %v654 = vpop.f32.mrb[0].mxu0
        %v655 = vadd.f32 %v576, %v654
        %656 = vmatprep.mubr.f32.mxu0 0.0
        %657 = vmatmul.mubr.f32.gmra.mrb[0].mxu0 %v584
        %v658 = vpop.f32.mrb[0].mxu0
        %v659 = vadd.f32 %v572, %v658
        %v660 = vpop.f32.mrb[0].mxu0
        %v661 = vadd.f32 %v576, %v660
        %662 = vdwg.mxu0
        %663 = vst [vmem:[%s554] sm:$0xff] %v653
        %664 = vst [vmem:[%s554 + $0x8] sm:$0xff] %v655
        %665 = vst [vmem:[%s554 + $0x10] sm:$0xff] %v659
        %666 = vst [vmem:[%s554 + $0x18] sm:$0xff] %v661
        %v667 = vld [vmem:[%s10] sm:$0xff]
        %v668 = vld [vmem:[%s10 + $0x8] sm:$0xff]
        %v669 = vld [vmem:[%s10 + $0x10] sm:$0xff]
        %v670 = vld [vmem:[%s10 + $0x18] sm:$0xff]
        %v671 = vld [vmem:[%s10 + $0x20] sm:$0xff]
        %v672 = vld [vmem:[%s10 + $0x28] sm:$0xff]
        %v673 = vld [vmem:[%s10 + $0x30] sm:$0xff]
        %v674 = vld [vmem:[%s10 + $0x38] sm:$0xff]
        %vm675 = vcmask 130048
        %v677 = vsel %vm675, %v667, 0
        %v680 = vsel %vm675, %v668, 0
        %v683 = vsel %vm675, %v669, 0
        %v686 = vsel %vm675, %v670, 0
        %v689 = vsel %vm675, %v671, 0
        %v692 = vsel %vm675, %v672, 0
        %v695 = vsel %vm675, %v673, 0
        %v698 = vsel %vm675, %v674, 0
        %700 = vmatprep.subr.mxu0 %v655
        %701 = vmatpush1.msra.mxu0 %v653
        %702 = vmatprep.subr.mxu0 %v661
        %703 = vmatpush1.msra.mxu0 %v659
        %704 = vmatprep.subr.mxu0 0.0
        %705 = vmatpush1.msra.mxu0 0.0
        %706 = vmatprep.subr.mxu0 0.0
        %707 = vmatpush1.msra.mxu0 0.0
        %708 = vmatprep.subr.mxu0 0.0
        %709 = vmatpush1.msra.mxu0 0.0
        %710 = vmatprep.subr.mxu0 0.0
        %711 = vmatpush1.msra.mxu0 0.0
        %712 = vmatprep.subr.mxu0 0.0
        %713 = vmatpush1.msra.mxu0 0.0
        %714 = vmatprep.subr.mxu0 0.0
        %715 = vmatpush1.msra.mxu0 0.0
        %716 = vmatprep.subr.mxu0 0.0
        %717 = vmatpush1.msra.mxu0 0.0
        %718 = vmatprep.subr.mxu0 0.0
        %719 = vmatpush1.msra.mxu0 0.0
        %720 = vmatprep.subr.mxu0 0.0
        %721 = vmatpush1.msra.mxu0 0.0
        %722 = vmatprep.subr.mxu0 0.0
        %723 = vmatpush1.msra.mxu0 0.0
        %724 = vmatprep.subr.mxu0 0.0
        %725 = vmatpush1.msra.mxu0 0.0
        %726 = vmatprep.subr.mxu0 0.0
        %727 = vmatpush1.msra.mxu0 0.0
        %728 = vmatprep.subr.mxu0 0.0
        %729 = vmatpush1.msra.mxu0 0.0
        %730 = vmatprep.subr.mxu0 0.0
        %731 = vmatpush1.msra.mxu0 0.0
        %732 = vmatprep.subr.mxu0 0.0
        %733 = vmatpush1.msra.mxu0 0.0
        %734 = vmatprep.subr.mxu0 0.0
        %735 = vmatpush1.msra.mxu0 0.0
        %736 = vmatprep.subr.mxu0 0.0
        %737 = vmatpush1.msra.mxu0 0.0
        %738 = vmatprep.subr.mxu0 0.0
        %739 = vmatpush1.msra.mxu0 0.0
        %740 = vmatprep.subr.mxu0 0.0
        %741 = vmatpush1.msra.mxu0 0.0
        %742 = vmatprep.subr.mxu0 0.0
        %743 = vmatpush1.msra.mxu0 0.0
        %744 = vmatprep.subr.mxu0 0.0
        %745 = vmatpush1.msra.mxu0 0.0
        %746 = vmatprep.subr.mxu0 0.0
        %747 = vmatpush1.msra.mxu0 0.0
        %748 = vmatprep.subr.mxu0 0.0
        %749 = vmatpush1.msra.mxu0 0.0
        %750 = vmatprep.subr.mxu0 0.0
        %751 = vmatpush1.msra.mxu0 0.0
        %752 = vmatprep.subr.mxu0 0.0
        %753 = vmatpush1.msra.mxu0 0.0
        %754 = vmatprep.subr.mxu0 0.0
        %755 = vmatpush1.msra.mxu0 0.0
        %756 = vmatprep.subr.mxu0 0.0
        %757 = vmatpush1.msra.mxu0 0.0
        %758 = vmatprep.subr.mxu0 0.0
        %759 = vmatpush1.msra.mxu0 0.0
        %760 = vmatprep.subr.mxu0 0.0
        %761 = vmatpush1.msra.mxu0 0.0
        %762 = vmatprep.subr.mxu0 0.0
        %763 = vmatpush1.msra.mxu0 0.0
        %764 = vmatprep.mubr.f32.mxu0 0.0
        %765 = vmatmul.mubr.f32.gmra.mrb[0].mxu0 %v677
        %v766 = vpop.f32.mrb[0].mxu0
        %v767 = vadd.f32 0.0, %v766
        %v768 = vpop.f32.mrb[0].mxu0
        %v769 = vadd.f32 0.0, %v768
        %770 = vmatprep.mubr.f32.mxu0 0.0
        %771 = vmatmul.mubr.f32.gmra.mrb[0].mxu0 %v680
        %v772 = vpop.f32.mrb[0].mxu0
        %v773 = vadd.f32 0.0, %v772
        %v774 = vpop.f32.mrb[0].mxu0
        %v775 = vadd.f32 0.0, %v774
        %776 = vmatprep.mubr.f32.mxu0 0.0
        %777 = vmatmul.mubr.f32.gmra.mrb[0].mxu0 %v683
        %v778 = vpop.f32.mrb[0].mxu0
        %v779 = vadd.f32 0.0, %v778
        %v780 = vpop.f32.mrb[0].mxu0
        %v781 = vadd.f32 0.0, %v780
        %782 = vmatprep.mubr.f32.mxu0 0.0
        %783 = vmatmul.mubr.f32.gmra.mrb[0].mxu0 %v686
        %v784 = vpop.f32.mrb[0].mxu0
        %v785 = vadd.f32 0.0, %v784
        %v786 = vpop.f32.mrb[0].mxu0
        %v787 = vadd.f32 0.0, %v786
        %788 = vmatprep.mubr.f32.mxu0 0.0
        %789 = vmatmul.mubr.f32.gmra.mrb[0].mxu0 %v689
        %v790 = vpop.f32.mrb[0].mxu0
        %v791 = vadd.f32 0.0, %v790
        %v792 = vpop.f32.mrb[0].mxu0
        %v793 = vadd.f32 0.0, %v792
        %794 = vmatprep.mubr.f32.mxu0 0.0
        %795 = vmatmul.mubr.f32.gmra.mrb[0].mxu0 %v692
        %v796 = vpop.f32.mrb[0].mxu0
        %v797 = vadd.f32 0.0, %v796
        %v798 = vpop.f32.mrb[0].mxu0
        %v799 = vadd.f32 0.0, %v798
        %800 = vmatprep.mubr.f32.mxu0 0.0
        %801 = vmatmul.mubr.f32.gmra.mrb[0].mxu0 %v695
        %v802 = vpop.f32.mrb[0].mxu0
        %v803 = vadd.f32 0.0, %v802
        %v804 = vpop.f32.mrb[0].mxu0
        %v805 = vadd.f32 0.0, %v804
        %806 = vmatprep.mubr.f32.mxu0 0.0
        %807 = vmatmul.mubr.f32.gmra.mrb[0].mxu0 %v698
        %v808 = vpop.f32.mrb[0].mxu0
        %v809 = vadd.f32 0.0, %v808
        %v810 = vpop.f32.mrb[0].mxu0
        %v811 = vadd.f32 0.0, %v810
        %812 = vdwg.mxu0
        %v813 = vld [vmem:[%s533] sm:$0xff]
        %v814 = vld [vmem:[%s533 + $0x8] sm:$0xff]
        %v815 = vld [vmem:[%s533 + $0x10] sm:$0xff]
        %v816 = vld [vmem:[%s533 + $0x18] sm:$0xff]
        %v817 = vld [vmem:[%s533 + $0x20] sm:$0xff]
        %v818 = vld [vmem:[%s533 + $0x28] sm:$0xff]
        %v819 = vld [vmem:[%s533 + $0x30] sm:$0xff]
        %v820 = vld [vmem:[%s533 + $0x38] sm:$0xff]
        %v821 = vld [vmem:[%s5] sm:$0xff]
        %v822 = vld [vmem:[%s5 + $0x8] sm:$0xff]
        %v823 = vld [vmem:[%s5 + $0x10] sm:$0xff]
        %v824 = vld [vmem:[%s5 + $0x18] sm:$0xff]
        %v825 = vld [vmem:[%s6] sm:$0x3]
        %v827 = vlaneseq
        %v828 = vshrl.u32 %v827, 7
        %v829 = vsub.s32 0, %v828
        %v830 = vrot.slane %v825, %v829
        %v831 = vlaneseq
        %v832 = vshrl.u32 %v831, 7
        %v833 = vsub.s32 1, %v832
        %v834 = vrot.slane %v825, %v833
        %v838 = vsel %vm675, %v813, 0
        %v841 = vsel %vm675, %v814, 0
        %v844 = vsel %vm675, %v815, 0
        %v847 = vsel %vm675, %v816, 0
        %v850 = vsel %vm675, %v817, 0
        %v853 = vsel %vm675, %v818, 0
        %v856 = vsel %vm675, %v819, 0
        %v859 = vsel %vm675, %v820, 0
        %861 = vmatprep.subr.mxu0 %v822
        %862 = vmatpush1.msra.mxu0 %v821
        %863 = vmatprep.subr.mxu0 %v824
        %864 = vmatpush1.msra.mxu0 %v823
        %865 = vmatprep.subr.mxu0 0.0
        %866 = vmatpush1.msra.mxu0 0.0
        %867 = vmatprep.subr.mxu0 0.0
        %868 = vmatpush1.msra.mxu0 0.0
        %869 = vmatprep.subr.mxu0 0.0
        %870 = vmatpush1.msra.mxu0 0.0
        %871 = vmatprep.subr.mxu0 0.0
        %872 = vmatpush1.msra.mxu0 0.0
        %873 = vmatprep.subr.mxu0 0.0
        %874 = vmatpush1.msra.mxu0 0.0
        %875 = vmatprep.subr.mxu0 0.0
        %876 = vmatpush1.msra.mxu0 0.0
        %877 = vmatprep.subr.mxu0 0.0
        %878 = vmatpush1.msra.mxu0 0.0
        %879 = vmatprep.subr.mxu0 0.0
        %880 = vmatpush1.msra.mxu0 0.0
        %881 = vmatprep.subr.mxu0 0.0
        %882 = vmatpush1.msra.mxu0 0.0
        %883 = vmatprep.subr.mxu0 0.0
        %884 = vmatpush1.msra.mxu0 0.0
        %885 = vmatprep.subr.mxu0 0.0
        %886 = vmatpush1.msra.mxu0 0.0
        %887 = vmatprep.subr.mxu0 0.0
        %888 = vmatpush1.msra.mxu0 0.0
        %889 = vmatprep.subr.mxu0 0.0
        %890 = vmatpush1.msra.mxu0 0.0
        %891 = vmatprep.subr.mxu0 0.0
        %892 = vmatpush1.msra.mxu0 0.0
        %893 = vmatprep.subr.mxu0 0.0
        %894 = vmatpush1.msra.mxu0 0.0
        %895 = vmatprep.subr.mxu0 0.0
        %896 = vmatpush1.msra.mxu0 0.0
        %897 = vmatprep.subr.mxu0 0.0
        %898 = vmatpush1.msra.mxu0 0.0
        %899 = vmatprep.subr.mxu0 0.0
        %900 = vmatpush1.msra.mxu0 0.0
        %901 = vmatprep.subr.mxu0 0.0
        %902 = vmatpush1.msra.mxu0 0.0
        %903 = vmatprep.subr.mxu0 0.0
        %904 = vmatpush1.msra.mxu0 0.0
        %905 = vmatprep.subr.mxu0 0.0
        %906 = vmatpush1.msra.mxu0 0.0
        %907 = vmatprep.subr.mxu0 0.0
        %908 = vmatpush1.msra.mxu0 0.0
        %909 = vmatprep.subr.mxu0 0.0
        %910 = vmatpush1.msra.mxu0 0.0
        %911 = vmatprep.subr.mxu0 0.0
        %912 = vmatpush1.msra.mxu0 0.0
        %913 = vmatprep.subr.mxu0 0.0
        %914 = vmatpush1.msra.mxu0 0.0
        %915 = vmatprep.subr.mxu0 0.0
        %916 = vmatpush1.msra.mxu0 0.0
        %917 = vmatprep.subr.mxu0 0.0
        %918 = vmatpush1.msra.mxu0 0.0
        %919 = vmatprep.subr.mxu0 0.0
        %920 = vmatpush1.msra.mxu0 0.0
        %921 = vmatprep.subr.mxu0 0.0
        %922 = vmatpush1.msra.mxu0 0.0
        %923 = vmatprep.subr.mxu0 0.0
        %924 = vmatpush1.msra.mxu0 0.0
        %925 = vmatprep.mubr.f32.mxu0 0.0
        %926 = vmatmul.mubr.f32.gmra.mrb[0].mxu0 %v838
        %v927 = vpop.f32.mrb[0].mxu0
        %v928 = vadd.f32 %v830, %v927
        %v929 = vpop.f32.mrb[0].mxu0
        %v930 = vadd.f32 %v834, %v929
        %931 = vmatprep.mubr.f32.mxu0 0.0
        %932 = vmatmul.mubr.f32.gmra.mrb[0].mxu0 %v841
        %v933 = vpop.f32.mrb[0].mxu0
        %v934 = vadd.f32 %v830, %v933
        %v935 = vpop.f32.mrb[0].mxu0
        %v936 = vadd.f32 %v834, %v935
        %937 = vmatprep.mubr.f32.mxu0 0.0
        %938 = vmatmul.mubr.f32.gmra.mrb[0].mxu0 %v844
        %v939 = vpop.f32.mrb[0].mxu0
        %v940 = vadd.f32 %v830, %v939
        %v941 = vpop.f32.mrb[0].mxu0
        %v942 = vadd.f32 %v834, %v941
        %943 = vmatprep.mubr.f32.mxu0 0.0
        %944 = vmatmul.mubr.f32.gmra.mrb[0].mxu0 %v847
        %v945 = vpop.f32.mrb[0].mxu0
        %v946 = vadd.f32 %v830, %v945
        %v947 = vpop.f32.mrb[0].mxu0
        %v948 = vadd.f32 %v834, %v947
        %949 = vmatprep.mubr.f32.mxu0 0.0
        %950 = vmatmul.mubr.f32.gmra.mrb[0].mxu0 %v850
        %v951 = vpop.f32.mrb[0].mxu0
        %v952 = vadd.f32 %v830, %v951
        %v953 = vpop.f32.mrb[0].mxu0
        %v954 = vadd.f32 %v834, %v953
        %955 = vmatprep.mubr.f32.mxu0 0.0
        %956 = vmatmul.mubr.f32.gmra.mrb[0].mxu0 %v853
        %v957 = vpop.f32.mrb[0].mxu0
        %v958 = vadd.f32 %v830, %v957
        %v959 = vpop.f32.mrb[0].mxu0
        %v960 = vadd.f32 %v834, %v959
        %961 = vmatprep.mubr.f32.mxu0 0.0
        %962 = vmatmul.mubr.f32.gmra.mrb[0].mxu0 %v856
        %v963 = vpop.f32.mrb[0].mxu0
        %v964 = vadd.f32 %v830, %v963
        %v965 = vpop.f32.mrb[0].mxu0
        %v966 = vadd.f32 %v834, %v965
        %967 = vmatprep.mubr.f32.mxu0 0.0
        %968 = vmatmul.mubr.f32.gmra.mrb[0].mxu0 %v859
        %v969 = vpop.f32.mrb[0].mxu0
        %v970 = vadd.f32 %v830, %v969
        %v971 = vpop.f32.mrb[0].mxu0
        %v972 = vadd.f32 %v834, %v971
        %973 = vdwg.mxu0
        %v974 = vadd.f32 %v928, %v767
        %v975 = vadd.f32 %v930, %v769
        %v976 = vadd.f32 %v934, %v773
        %v977 = vadd.f32 %v936, %v775
        %v978 = vadd.f32 %v940, %v779
        %v979 = vadd.f32 %v942, %v781
        %v980 = vadd.f32 %v946, %v785
        %v981 = vadd.f32 %v948, %v787
        %v982 = vadd.f32 %v952, %v791
        %v983 = vadd.f32 %v954, %v793
        %v984 = vadd.f32 %v958, %v797
        %v985 = vadd.f32 %v960, %v799
        %v986 = vadd.f32 %v964, %v803
        %v987 = vadd.f32 %v966, %v805
        %v988 = vadd.f32 %v970, %v809
        %v989 = vadd.f32 %v972, %v811
        %990 = vst [vmem:[%s510] sm:$0xff] %v974
        %991 = vst [vmem:[%s510 + $0x8] sm:$0xff] %v975
        %992 = vst [vmem:[%s510 + $0x10] sm:$0xff] %v976
        %993 = vst [vmem:[%s510 + $0x18] sm:$0xff] %v977
        %994 = vst [vmem:[%s510 + $0x20] sm:$0xff] %v978
        %995 = vst [vmem:[%s510 + $0x28] sm:$0xff] %v979
        %996 = vst [vmem:[%s510 + $0x30] sm:$0xff] %v980
        %997 = vst [vmem:[%s510 + $0x38] sm:$0xff] %v981
        %998 = vst [vmem:[%s510 + $0x40] sm:$0xff] %v982
        %999 = vst [vmem:[%s510 + $0x48] sm:$0xff] %v983
        %1000 = vst [vmem:[%s510 + $0x50] sm:$0xff] %v984
        %1001 = vst [vmem:[%s510 + $0x58] sm:$0xff] %v985
        %1002 = vst [vmem:[%s510 + $0x60] sm:$0xff] %v986
        %1003 = vst [vmem:[%s510 + $0x68] sm:$0xff] %v987
        %1004 = vst [vmem:[%s510 + $0x70] sm:$0xff] %v988
        %1005 = vst [vmem:[%s510 + $0x78] sm:$0xff] %v989
        %v1006 = vld [vmem:[%s9] sm:$0xff]
        %v1007 = vld [vmem:[%s9 + $0x8] sm:$0xff]
        %v1008 = vld [vmem:[%s9 + $0x10] sm:$0xff]
        %v1009 = vld [vmem:[%s9 + $0x18] sm:$0xff]
        %v1010 = vld [vmem:[%s9 + $0x20] sm:$0xff]
        %v1011 = vld [vmem:[%s9 + $0x28] sm:$0xff]
        %v1012 = vld [vmem:[%s9 + $0x30] sm:$0xff]
        %v1013 = vld [vmem:[%s9 + $0x38] sm:$0xff]
        %v1014 = vld [vmem:[%s9 + $0x40] sm:$0xff]
        %v1015 = vld [vmem:[%s9 + $0x48] sm:$0xff]
        %v1016 = vld [vmem:[%s9 + $0x50] sm:$0xff]
        %v1017 = vld [vmem:[%s9 + $0x58] sm:$0xff]
        %v1018 = vld [vmem:[%s9 + $0x60] sm:$0xff]
        %v1019 = vld [vmem:[%s9 + $0x68] sm:$0xff]
        %v1020 = vld [vmem:[%s9 + $0x70] sm:$0xff]
        %v1021 = vld [vmem:[%s9 + $0x78] sm:$0xff]
        %v1022 = vld [vmem:[%s9 + $0x80] sm:$0xff]
        %v1023 = vld [vmem:[%s9 + $0x88] sm:$0xff]
        %v1024 = vld [vmem:[%s9 + $0x90] sm:$0xff]
        %v1025 = vld [vmem:[%s9 + $0x98] sm:$0xff]
        %v1026 = vld [vmem:[%s9 + $0xa0] sm:$0xff]
        %v1027 = vld [vmem:[%s9 + $0xa8] sm:$0xff]
        %v1028 = vld [vmem:[%s9 + $0xb0] sm:$0xff]
        %v1029 = vld [vmem:[%s9 + $0xb8] sm:$0xff]
        %v1030 = vld [vmem:[%s9 + $0xc0] sm:$0xff]
        %v1031 = vld [vmem:[%s9 + $0xc8] sm:$0xff]
        %v1032 = vld [vmem:[%s9 + $0xd0] sm:$0xff]
        %v1033 = vld [vmem:[%s9 + $0xd8] sm:$0xff]
        %v1034 = vld [vmem:[%s9 + $0xe0] sm:$0xff]
        %v1035 = vld [vmem:[%s9 + $0xe8] sm:$0xff]
        %v1036 = vld [vmem:[%s9 + $0xf0] sm:$0xff]
        %v1037 = vld [vmem:[%s9 + $0xf8] sm:$0xff]
        %vm1038 = vcmask 523264
        %v1040 = vsel %vm1038, %v1006, 0
        %v1043 = vsel %vm1038, %v1007, 0
        %v1046 = vsel %vm1038, %v1008, 0
        %v1049 = vsel %vm1038, %v1009, 0
        %v1052 = vsel %vm1038, %v1010, 0
        %v1055 = vsel %vm1038, %v1011, 0
        %v1058 = vsel %vm1038, %v1012, 0
        %v1061 = vsel %vm1038, %v1013, 0
        %v1064 = vsel %vm1038, %v1014, 0
        %v1067 = vsel %vm1038, %v1015, 0
        %v1070 = vsel %vm1038, %v1016, 0
        %v1073 = vsel %vm1038, %v1017, 0
        %v1076 = vsel %vm1038, %v1018, 0
        %v1079 = vsel %vm1038, %v1019, 0
        %v1082 = vsel %vm1038, %v1020, 0
        %v1085 = vsel %vm1038, %v1021, 0
        %v1088 = vsel %vm1038, %v1022, 0
        %v1091 = vsel %vm1038, %v1023, 0
        %v1094 = vsel %vm1038, %v1024, 0
        %v1097 = vsel %vm1038, %v1025, 0
        %v1100 = vsel %vm1038, %v1026, 0
        %v1103 = vsel %vm1038, %v1027, 0
        %v1106 = vsel %vm1038, %v1028, 0
        %v1109 = vsel %vm1038, %v1029, 0
        %v1112 = vsel %vm1038, %v1030, 0
        %v1115 = vsel %vm1038, %v1031, 0
        %v1118 = vsel %vm1038, %v1032, 0
        %v1121 = vsel %vm1038, %v1033, 0
        %v1124 = vsel %vm1038, %v1034, 0
        %v1127 = vsel %vm1038, %v1035, 0
        %v1130 = vsel %vm1038, %v1036, 0
        %v1133 = vsel %vm1038, %v1037, 0
        %1135 = vmatprep.subr.mxu0 %v975
        %1136 = vmatpush1.msra.mxu0 %v974
        %1137 = vmatprep.subr.mxu0 %v977
        %1138 = vmatpush1.msra.mxu0 %v976
        %1139 = vmatprep.subr.mxu0 %v979
        %1140 = vmatpush1.msra.mxu0 %v978
        %1141 = vmatprep.subr.mxu0 %v981
        %1142 = vmatpush1.msra.mxu0 %v980
        %1143 = vmatprep.subr.mxu0 %v983
        %1144 = vmatpush1.msra.mxu0 %v982
        %1145 = vmatprep.subr.mxu0 %v985
        %1146 = vmatpush1.msra.mxu0 %v984
        %1147 = vmatprep.subr.mxu0 %v987
        %1148 = vmatpush1.msra.mxu0 %v986
        %1149 = vmatprep.subr.mxu0 %v989
        %1150 = vmatpush1.msra.mxu0 %v988
        %1151 = vmatprep.subr.mxu0 0.0
        %1152 = vmatpush1.msra.mxu0 0.0
        %1153 = vmatprep.subr.mxu0 0.0
        %1154 = vmatpush1.msra.mxu0 0.0
        %1155 = vmatprep.subr.mxu0 0.0
        %1156 = vmatpush1.msra.mxu0 0.0
        %1157 = vmatprep.subr.mxu0 0.0
        %1158 = vmatpush1.msra.mxu0 0.0
        %1159 = vmatprep.subr.mxu0 0.0
        %1160 = vmatpush1.msra.mxu0 0.0
        %1161 = vmatprep.subr.mxu0 0.0
        %1162 = vmatpush1.msra.mxu0 0.0
        %1163 = vmatprep.subr.mxu0 0.0
        %1164 = vmatpush1.msra.mxu0 0.0
        %1165 = vmatprep.subr.mxu0 0.0
        %1166 = vmatpush1.msra.mxu0 0.0
        %1167 = vmatprep.subr.mxu0 0.0
        %1168 = vmatpush1.msra.mxu0 0.0
        %1169 = vmatprep.subr.mxu0 0.0
        %1170 = vmatpush1.msra.mxu0 0.0
        %1171 = vmatprep.subr.mxu0 0.0
        %1172 = vmatpush1.msra.mxu0 0.0
        %1173 = vmatprep.subr.mxu0 0.0
        %1174 = vmatpush1.msra.mxu0 0.0
        %1175 = vmatprep.subr.mxu0 0.0
        %1176 = vmatpush1.msra.mxu0 0.0
        %1177 = vmatprep.subr.mxu0 0.0
        %1178 = vmatpush1.msra.mxu0 0.0
        %1179 = vmatprep.subr.mxu0 0.0
        %1180 = vmatpush1.msra.mxu0 0.0
        %1181 = vmatprep.subr.mxu0 0.0
        %1182 = vmatpush1.msra.mxu0 0.0
        %1183 = vmatprep.subr.mxu0 0.0
        %1184 = vmatpush1.msra.mxu0 0.0
        %1185 = vmatprep.subr.mxu0 0.0
        %1186 = vmatpush1.msra.mxu0 0.0
        %1187 = vmatprep.subr.mxu0 0.0
        %1188 = vmatpush1.msra.mxu0 0.0
        %1189 = vmatprep.subr.mxu0 0.0
        %1190 = vmatpush1.msra.mxu0 0.0
        %1191 = vmatprep.subr.mxu0 0.0
        %1192 = vmatpush1.msra.mxu0 0.0
        %1193 = vmatprep.subr.mxu0 0.0
        %1194 = vmatpush1.msra.mxu0 0.0
        %1195 = vmatprep.subr.mxu0 0.0
        %1196 = vmatpush1.msra.mxu0 0.0
        %1197 = vmatprep.subr.mxu0 0.0
        %1198 = vmatpush1.msra.mxu0 0.0
        %1199 = vmatprep.mubr.f32.mxu0 0.0
        %1200 = vmatmul.mubr.f32.gmra.mrb[0].mxu0 %v1040
        %v1201 = vpop.f32.mrb[0].mxu0
        %v1202 = vadd.f32 0.0, %v1201
        %v1203 = vpop.f32.mrb[0].mxu0
        %v1204 = vadd.f32 0.0, %v1203
        %1205 = vmatprep.mubr.f32.mxu0 0.0
        %1206 = vmatmul.mubr.f32.gmra.mrb[0].mxu0 %v1043
        %v1207 = vpop.f32.mrb[0].mxu0
        %v1208 = vadd.f32 0.0, %v1207
        %v1209 = vpop.f32.mrb[0].mxu0
        %v1210 = vadd.f32 0.0, %v1209
        %1211 = vmatprep.mubr.f32.mxu0 0.0
        %1212 = vmatmul.mubr.f32.gmra.mrb[0].mxu0 %v1046
        %v1213 = vpop.f32.mrb[0].mxu0
        %v1214 = vadd.f32 0.0, %v1213
        %v1215 = vpop.f32.mrb[0].mxu0
        %v1216 = vadd.f32 0.0, %v1215
        %1217 = vmatprep.mubr.f32.mxu0 0.0
        %1218 = vmatmul.mubr.f32.gmra.mrb[0].mxu0 %v1049
        %v1219 = vpop.f32.mrb[0].mxu0
        %v1220 = vadd.f32 0.0, %v1219
        %v1221 = vpop.f32.mrb[0].mxu0
        %v1222 = vadd.f32 0.0, %v1221
        %1223 = vmatprep.mubr.f32.mxu0 0.0
        %1224 = vmatmul.mubr.f32.gmra.mrb[0].mxu0 %v1052
        %v1225 = vpop.f32.mrb[0].mxu0
        %v1226 = vadd.f32 0.0, %v1225
        %v1227 = vpop.f32.mrb[0].mxu0
        %v1228 = vadd.f32 0.0, %v1227
        %1229 = vmatprep.mubr.f32.mxu0 0.0
        %1230 = vmatmul.mubr.f32.gmra.mrb[0].mxu0 %v1055
        %v1231 = vpop.f32.mrb[0].mxu0
        %v1232 = vadd.f32 0.0, %v1231
        %v1233 = vpop.f32.mrb[0].mxu0
        %v1234 = vadd.f32 0.0, %v1233
        %1235 = vmatprep.mubr.f32.mxu0 0.0
        %1236 = vmatmul.mubr.f32.gmra.mrb[0].mxu0 %v1058
        %v1237 = vpop.f32.mrb[0].mxu0
        %v1238 = vadd.f32 0.0, %v1237
        %v1239 = vpop.f32.mrb[0].mxu0
        %v1240 = vadd.f32 0.0, %v1239
        %1241 = vmatprep.mubr.f32.mxu0 0.0
        %1242 = vmatmul.mubr.f32.gmra.mrb[0].mxu0 %v1061
        %v1243 = vpop.f32.mrb[0].mxu0
        %v1244 = vadd.f32 0.0, %v1243
        %v1245 = vpop.f32.mrb[0].mxu0
        %v1246 = vadd.f32 0.0, %v1245
        %1247 = vmatprep.mubr.f32.mxu0 0.0
        %1248 = vmatmul.mubr.f32.gmra.mrb[0].mxu0 %v1064
        %v1249 = vpop.f32.mrb[0].mxu0
        %v1250 = vadd.f32 0.0, %v1249
        %v1251 = vpop.f32.mrb[0].mxu0
        %v1252 = vadd.f32 0.0, %v1251
        %1253 = vmatprep.mubr.f32.mxu0 0.0
        %1254 = vmatmul.mubr.f32.gmra.mrb[0].mxu0 %v1067
        %v1255 = vpop.f32.mrb[0].mxu0
        %v1256 = vadd.f32 0.0, %v1255
        %v1257 = vpop.f32.mrb[0].mxu0
        %v1258 = vadd.f32 0.0, %v1257
        %1259 = vmatprep.mubr.f32.mxu0 0.0
        %1260 = vmatmul.mubr.f32.gmra.mrb[0].mxu0 %v1070
        %v1261 = vpop.f32.mrb[0].mxu0
        %v1262 = vadd.f32 0.0, %v1261
        %v1263 = vpop.f32.mrb[0].mxu0
        %v1264 = vadd.f32 0.0, %v1263
        %1265 = vmatprep.mubr.f32.mxu0 0.0
        %1266 = vmatmul.mubr.f32.gmra.mrb[0].mxu0 %v1073
        %v1267 = vpop.f32.mrb[0].mxu0
        %v1268 = vadd.f32 0.0, %v1267
        %v1269 = vpop.f32.mrb[0].mxu0
        %v1270 = vadd.f32 0.0, %v1269
        %1271 = vmatprep.mubr.f32.mxu0 0.0
        %1272 = vmatmul.mubr.f32.gmra.mrb[0].mxu0 %v1076
        %v1273 = vpop.f32.mrb[0].mxu0
        %v1274 = vadd.f32 0.0, %v1273
        %v1275 = vpop.f32.mrb[0].mxu0
        %v1276 = vadd.f32 0.0, %v1275
        %1277 = vmatprep.mubr.f32.mxu0 0.0
        %1278 = vmatmul.mubr.f32.gmra.mrb[0].mxu0 %v1079
        %v1279 = vpop.f32.mrb[0].mxu0
        %v1280 = vadd.f32 0.0, %v1279
        %v1281 = vpop.f32.mrb[0].mxu0
        %v1282 = vadd.f32 0.0, %v1281
        %1283 = vmatprep.mubr.f32.mxu0 0.0
        %1284 = vmatmul.mubr.f32.gmra.mrb[0].mxu0 %v1082
        %v1285 = vpop.f32.mrb[0].mxu0
        %v1286 = vadd.f32 0.0, %v1285
        %v1287 = vpop.f32.mrb[0].mxu0
        %v1288 = vadd.f32 0.0, %v1287
        %1289 = vmatprep.mubr.f32.mxu0 0.0
        %1290 = vmatmul.mubr.f32.gmra.mrb[0].mxu0 %v1085
        %v1291 = vpop.f32.mrb[0].mxu0
        %v1292 = vadd.f32 0.0, %v1291
        %v1293 = vpop.f32.mrb[0].mxu0
        %v1294 = vadd.f32 0.0, %v1293
        %1295 = vmatprep.mubr.f32.mxu0 0.0
        %1296 = vmatmul.mubr.f32.gmra.mrb[0].mxu0 %v1088
        %v1297 = vpop.f32.mrb[0].mxu0
        %v1298 = vadd.f32 0.0, %v1297
        %v1299 = vpop.f32.mrb[0].mxu0
        %v1300 = vadd.f32 0.0, %v1299
        %1301 = vmatprep.mubr.f32.mxu0 0.0
        %1302 = vmatmul.mubr.f32.gmra.mrb[0].mxu0 %v1091
        %v1303 = vpop.f32.mrb[0].mxu0
        %v1304 = vadd.f32 0.0, %v1303
        %v1305 = vpop.f32.mrb[0].mxu0
        %v1306 = vadd.f32 0.0, %v1305
        %1307 = vmatprep.mubr.f32.mxu0 0.0
        %1308 = vmatmul.mubr.f32.gmra.mrb[0].mxu0 %v1094
        %v1309 = vpop.f32.mrb[0].mxu0
        %v1310 = vadd.f32 0.0, %v1309
        %v1311 = vpop.f32.mrb[0].mxu0
        %v1312 = vadd.f32 0.0, %v1311
        %1313 = vmatprep.mubr.f32.mxu0 0.0
        %1314 = vmatmul.mubr.f32.gmra.mrb[0].mxu0 %v1097
        %v1315 = vpop.f32.mrb[0].mxu0
        %v1316 = vadd.f32 0.0, %v1315
        %v1317 = vpop.f32.mrb[0].mxu0
        %v1318 = vadd.f32 0.0, %v1317
        %1319 = vmatprep.mubr.f32.mxu0 0.0
        %1320 = vmatmul.mubr.f32.gmra.mrb[0].mxu0 %v1100
        %v1321 = vpop.f32.mrb[0].mxu0
        %v1322 = vadd.f32 0.0, %v1321
        %v1323 = vpop.f32.mrb[0].mxu0
        %v1324 = vadd.f32 0.0, %v1323
        %1325 = vmatprep.mubr.f32.mxu0 0.0
        %1326 = vmatmul.mubr.f32.gmra.mrb[0].mxu0 %v1103
        %v1327 = vpop.f32.mrb[0].mxu0
        %v1328 = vadd.f32 0.0, %v1327
        %v1329 = vpop.f32.mrb[0].mxu0
        %v1330 = vadd.f32 0.0, %v1329
        %1331 = vmatprep.mubr.f32.mxu0 0.0
        %1332 = vmatmul.mubr.f32.gmra.mrb[0].mxu0 %v1106
        %v1333 = vpop.f32.mrb[0].mxu0
        %v1334 = vadd.f32 0.0, %v1333
        %v1335 = vpop.f32.mrb[0].mxu0
        %v1336 = vadd.f32 0.0, %v1335
        %1337 = vmatprep.mubr.f32.mxu0 0.0
        %1338 = vmatmul.mubr.f32.gmra.mrb[0].mxu0 %v1109
        %v1339 = vpop.f32.mrb[0].mxu0
        %v1340 = vadd.f32 0.0, %v1339
        %v1341 = vpop.f32.mrb[0].mxu0
        %v1342 = vadd.f32 0.0, %v1341
        %1343 = vmatprep.mubr.f32.mxu0 0.0
        %1344 = vmatmul.mubr.f32.gmra.mrb[0].mxu0 %v1112
        %v1345 = vpop.f32.mrb[0].mxu0
        %v1346 = vadd.f32 0.0, %v1345
        %v1347 = vpop.f32.mrb[0].mxu0
        %v1348 = vadd.f32 0.0, %v1347
        %1349 = vmatprep.mubr.f32.mxu0 0.0
        %1350 = vmatmul.mubr.f32.gmra.mrb[0].mxu0 %v1115
        %v1351 = vpop.f32.mrb[0].mxu0
        %v1352 = vadd.f32 0.0, %v1351
        %v1353 = vpop.f32.mrb[0].mxu0
        %v1354 = vadd.f32 0.0, %v1353
        %1355 = vmatprep.mubr.f32.mxu0 0.0
        %1356 = vmatmul.mubr.f32.gmra.mrb[0].mxu0 %v1118
        %v1357 = vpop.f32.mrb[0].mxu0
        %v1358 = vadd.f32 0.0, %v1357
        %v1359 = vpop.f32.mrb[0].mxu0
        %v1360 = vadd.f32 0.0, %v1359
        %1361 = vmatprep.mubr.f32.mxu0 0.0
        %1362 = vmatmul.mubr.f32.gmra.mrb[0].mxu0 %v1121
        %v1363 = vpop.f32.mrb[0].mxu0
        %v1364 = vadd.f32 0.0, %v1363
        %v1365 = vpop.f32.mrb[0].mxu0
        %v1366 = vadd.f32 0.0, %v1365
        %1367 = vmatprep.mubr.f32.mxu0 0.0
        %1368 = vmatmul.mubr.f32.gmra.mrb[0].mxu0 %v1124
        %v1369 = vpop.f32.mrb[0].mxu0
        %v1370 = vadd.f32 0.0, %v1369
        %v1371 = vpop.f32.mrb[0].mxu0
        %v1372 = vadd.f32 0.0, %v1371
        %1373 = vmatprep.mubr.f32.mxu0 0.0
        %1374 = vmatmul.mubr.f32.gmra.mrb[0].mxu0 %v1127
        %v1375 = vpop.f32.mrb[0].mxu0
        %v1376 = vadd.f32 0.0, %v1375
        %v1377 = vpop.f32.mrb[0].mxu0
        %v1378 = vadd.f32 0.0, %v1377
        %1379 = vmatprep.mubr.f32.mxu0 0.0
        %1380 = vmatmul.mubr.f32.gmra.mrb[0].mxu0 %v1130
        %v1381 = vpop.f32.mrb[0].mxu0
        %v1382 = vadd.f32 0.0, %v1381
        %v1383 = vpop.f32.mrb[0].mxu0
        %v1384 = vadd.f32 0.0, %v1383
        %1385 = vmatprep.mubr.f32.mxu0 0.0
        %1386 = vmatmul.mubr.f32.gmra.mrb[0].mxu0 %v1133
        %v1387 = vpop.f32.mrb[0].mxu0
        %v1388 = vadd.f32 0.0, %v1387
        %v1389 = vpop.f32.mrb[0].mxu0
        %v1390 = vadd.f32 0.0, %v1389
        %1391 = vdwg.mxu0
        %v1392 = vld [vmem:[%s525] sm:$0xff]
        %v1393 = vld [vmem:[%s525 + $0x8] sm:$0xff]
        %v1394 = vld [vmem:[%s525 + $0x10] sm:$0xff]
        %v1395 = vld [vmem:[%s525 + $0x18] sm:$0xff]
        %v1396 = vld [vmem:[%s525 + $0x20] sm:$0xff]
        %v1397 = vld [vmem:[%s525 + $0x28] sm:$0xff]
        %v1398 = vld [vmem:[%s525 + $0x30] sm:$0xff]
        %v1399 = vld [vmem:[%s525 + $0x38] sm:$0xff]
        %v1400 = vld [vmem:[%s525 + $0x40] sm:$0xff]
        %v1401 = vld [vmem:[%s525 + $0x48] sm:$0xff]
        %v1402 = vld [vmem:[%s525 + $0x50] sm:$0xff]
        %v1403 = vld [vmem:[%s525 + $0x58] sm:$0xff]
        %v1404 = vld [vmem:[%s525 + $0x60] sm:$0xff]
        %v1405 = vld [vmem:[%s525 + $0x68] sm:$0xff]
        %v1406 = vld [vmem:[%s525 + $0x70] sm:$0xff]
        %v1407 = vld [vmem:[%s525 + $0x78] sm:$0xff]
        %v1408 = vld [vmem:[%s525 + $0x80] sm:$0xff]
        %v1409 = vld [vmem:[%s525 + $0x88] sm:$0xff]
        %v1410 = vld [vmem:[%s525 + $0x90] sm:$0xff]
        %v1411 = vld [vmem:[%s525 + $0x98] sm:$0xff]
        %v1412 = vld [vmem:[%s525 + $0xa0] sm:$0xff]
        %v1413 = vld [vmem:[%s525 + $0xa8] sm:$0xff]
        %v1414 = vld [vmem:[%s525 + $0xb0] sm:$0xff]
        %v1415 = vld [vmem:[%s525 + $0xb8] sm:$0xff]
        %v1416 = vld [vmem:[%s525 + $0xc0] sm:$0xff]
        %v1417 = vld [vmem:[%s525 + $0xc8] sm:$0xff]
        %v1418 = vld [vmem:[%s525 + $0xd0] sm:$0xff]
        %v1419 = vld [vmem:[%s525 + $0xd8] sm:$0xff]
        %v1420 = vld [vmem:[%s525 + $0xe0] sm:$0xff]
        %v1421 = vld [vmem:[%s525 + $0xe8] sm:$0xff]
        %v1422 = vld [vmem:[%s525 + $0xf0] sm:$0xff]
        %v1423 = vld [vmem:[%s525 + $0xf8] sm:$0xff]
        %v1424 = vld [vmem:[%s3] sm:$0xff]
        %v1425 = vld [vmem:[%s3 + $0x8] sm:$0xff]
        %v1426 = vld [vmem:[%s4] sm:$0x3]
        %v1428 = vlaneseq
        %v1429 = vshrl.u32 %v1428, 7
        %v1430 = vsub.s32 0, %v1429
        %v1431 = vrot.slane %v1426, %v1430
        %v1432 = vlaneseq
        %v1433 = vshrl.u32 %v1432, 7
        %v1434 = vsub.s32 1, %v1433
        %v1435 = vrot.slane %v1426, %v1434
        %vm1438 = vcmask 64512
        %v1440 = vsel %vm1438, %v1392, 0
        %v1443 = vsel %vm1438, %v1393, 0
        %v1446 = vsel %vm1438, %v1394, 0
        %v1449 = vsel %vm1438, %v1395, 0
        %v1452 = vsel %vm1438, %v1396, 0
        %v1455 = vsel %vm1438, %v1397, 0
        %v1458 = vsel %vm1438, %v1398, 0
        %v1461 = vsel %vm1438, %v1399, 0
        %v1464 = vsel %vm1438, %v1400, 0
        %v1467 = vsel %vm1438, %v1401, 0
        %v1470 = vsel %vm1438, %v1402, 0
        %v1473 = vsel %vm1438, %v1403, 0
        %v1476 = vsel %vm1438, %v1404, 0
        %v1479 = vsel %vm1438, %v1405, 0
        %v1482 = vsel %vm1438, %v1406, 0
        %v1485 = vsel %vm1438, %v1407, 0
        %v1488 = vsel %vm1438, %v1408, 0
        %v1491 = vsel %vm1438, %v1409, 0
        %v1494 = vsel %vm1438, %v1410, 0
        %v1497 = vsel %vm1438, %v1411, 0
        %v1500 = vsel %vm1438, %v1412, 0
        %v1503 = vsel %vm1438, %v1413, 0
        %v1506 = vsel %vm1438, %v1414, 0
        %v1509 = vsel %vm1438, %v1415, 0
        %v1512 = vsel %vm1438, %v1416, 0
        %v1515 = vsel %vm1438, %v1417, 0
        %v1518 = vsel %vm1438, %v1418, 0
        %v1521 = vsel %vm1438, %v1419, 0
        %v1524 = vsel %vm1438, %v1420, 0
        %v1527 = vsel %vm1438, %v1421, 0
        %v1530 = vsel %vm1438, %v1422, 0
        %v1533 = vsel %vm1438, %v1423, 0
        %1535 = vmatprep.subr.mxu0 %v1425
        %1536 = vmatpush1.msra.mxu0 %v1424
        %1537 = vmatprep.subr.mxu0 0.0
        %1538 = vmatpush1.msra.mxu0 0.0
        %1539 = vmatprep.subr.mxu0 0.0
        %1540 = vmatpush1.msra.mxu0 0.0
        %1541 = vmatprep.subr.mxu0 0.0
        %1542 = vmatpush1.msra.mxu0 0.0
        %1543 = vmatprep.subr.mxu0 0.0
        %1544 = vmatpush1.msra.mxu0 0.0
        %1545 = vmatprep.subr.mxu0 0.0
        %1546 = vmatpush1.msra.mxu0 0.0
        %1547 = vmatprep.subr.mxu0 0.0
        %1548 = vmatpush1.msra.mxu0 0.0
        %1549 = vmatprep.subr.mxu0 0.0
        %1550 = vmatpush1.msra.mxu0 0.0
        %1551 = vmatprep.subr.mxu0 0.0
        %1552 = vmatpush1.msra.mxu0 0.0
        %1553 = vmatprep.subr.mxu0 0.0
        %1554 = vmatpush1.msra.mxu0 0.0
        %1555 = vmatprep.subr.mxu0 0.0
        %1556 = vmatpush1.msra.mxu0 0.0
        %1557 = vmatprep.subr.mxu0 0.0
        %1558 = vmatpush1.msra.mxu0 0.0
        %1559 = vmatprep.subr.mxu0 0.0
        %1560 = vmatpush1.msra.mxu0 0.0
        %1561 = vmatprep.subr.mxu0 0.0
        %1562 = vmatpush1.msra.mxu0 0.0
        %1563 = vmatprep.subr.mxu0 0.0
        %1564 = vmatpush1.msra.mxu0 0.0
        %1565 = vmatprep.subr.mxu0 0.0
        %1566 = vmatpush1.msra.mxu0 0.0
        %1567 = vmatprep.subr.mxu0 0.0
        %1568 = vmatpush1.msra.mxu0 0.0
        %1569 = vmatprep.subr.mxu0 0.0
        %1570 = vmatpush1.msra.mxu0 0.0
        %1571 = vmatprep.subr.mxu0 0.0
        %1572 = vmatpush1.msra.mxu0 0.0
        %1573 = vmatprep.subr.mxu0 0.0
        %1574 = vmatpush1.msra.mxu0 0.0
        %1575 = vmatprep.subr.mxu0 0.0
        %1576 = vmatpush1.msra.mxu0 0.0
        %1577 = vmatprep.subr.mxu0 0.0
        %1578 = vmatpush1.msra.mxu0 0.0
        %1579 = vmatprep.subr.mxu0 0.0
        %1580 = vmatpush1.msra.mxu0 0.0
        %1581 = vmatprep.subr.mxu0 0.0
        %1582 = vmatpush1.msra.mxu0 0.0
        %1583 = vmatprep.subr.mxu0 0.0
        %1584 = vmatpush1.msra.mxu0 0.0
        %1585 = vmatprep.subr.mxu0 0.0
        %1586 = vmatpush1.msra.mxu0 0.0
        %1587 = vmatprep.subr.mxu0 0.0
        %1588 = vmatpush1.msra.mxu0 0.0
        %1589 = vmatprep.subr.mxu0 0.0
        %1590 = vmatpush1.msra.mxu0 0.0
        %1591 = vmatprep.subr.mxu0 0.0
        %1592 = vmatpush1.msra.mxu0 0.0
        %1593 = vmatprep.subr.mxu0 0.0
        %1594 = vmatpush1.msra.mxu0 0.0
        %1595 = vmatprep.subr.mxu0 0.0
        %1596 = vmatpush1.msra.mxu0 0.0
        %1597 = vmatprep.subr.mxu0 0.0
        %1598 = vmatpush1.msra.mxu0 0.0
        %1599 = vmatprep.mubr.f32.mxu0 0.0
        %1600 = vmatmul.mubr.f32.gmra.mrb[0].mxu0 %v1440
        %v1601 = vpop.f32.mrb[0].mxu0
        %v1602 = vadd.f32 %v1431, %v1601
        %v1603 = vpop.f32.mrb[0].mxu0
        %v1604 = vadd.f32 %v1435, %v1603
        %1605 = vmatprep.mubr.f32.mxu0 0.0
        %1606 = vmatmul.mubr.f32.gmra.mrb[0].mxu0 %v1443
        %v1607 = vpop.f32.mrb[0].mxu0
        %v1608 = vadd.f32 %v1431, %v1607
        %v1609 = vpop.f32.mrb[0].mxu0
        %v1610 = vadd.f32 %v1435, %v1609
        %1611 = vmatprep.mubr.f32.mxu0 0.0
        %1612 = vmatmul.mubr.f32.gmra.mrb[0].mxu0 %v1446
        %v1613 = vpop.f32.mrb[0].mxu0
        %v1614 = vadd.f32 %v1431, %v1613
        %v1615 = vpop.f32.mrb[0].mxu0
        %v1616 = vadd.f32 %v1435, %v1615
        %1617 = vmatprep.mubr.f32.mxu0 0.0
        %1618 = vmatmul.mubr.f32.gmra.mrb[0].mxu0 %v1449
        %v1619 = vpop.f32.mrb[0].mxu0
        %v1620 = vadd.f32 %v1431, %v1619
        %v1621 = vpop.f32.mrb[0].mxu0
        %v1622 = vadd.f32 %v1435, %v1621
        %1623 = vmatprep.mubr.f32.mxu0 0.0
        %1624 = vmatmul.mubr.f32.gmra.mrb[0].mxu0 %v1452
        %v1625 = vpop.f32.mrb[0].mxu0
        %v1626 = vadd.f32 %v1431, %v1625
        %v1627 = vpop.f32.mrb[0].mxu0
        %v1628 = vadd.f32 %v1435, %v1627
        %1629 = vmatprep.mubr.f32.mxu0 0.0
        %1630 = vmatmul.mubr.f32.gmra.mrb[0].mxu0 %v1455
        %v1631 = vpop.f32.mrb[0].mxu0
        %v1632 = vadd.f32 %v1431, %v1631
        %v1633 = vpop.f32.mrb[0].mxu0
        %v1634 = vadd.f32 %v1435, %v1633
        %1635 = vmatprep.mubr.f32.mxu0 0.0
        %1636 = vmatmul.mubr.f32.gmra.mrb[0].mxu0 %v1458
        %v1637 = vpop.f32.mrb[0].mxu0
        %v1638 = vadd.f32 %v1431, %v1637
        %v1639 = vpop.f32.mrb[0].mxu0
        %v1640 = vadd.f32 %v1435, %v1639
        %1641 = vmatprep.mubr.f32.mxu0 0.0
        %1642 = vmatmul.mubr.f32.gmra.mrb[0].mxu0 %v1461
        %v1643 = vpop.f32.mrb[0].mxu0
        %v1644 = vadd.f32 %v1431, %v1643
        %v1645 = vpop.f32.mrb[0].mxu0
        %v1646 = vadd.f32 %v1435, %v1645
        %1647 = vmatprep.mubr.f32.mxu0 0.0
        %1648 = vmatmul.mubr.f32.gmra.mrb[0].mxu0 %v1464
        %v1649 = vpop.f32.mrb[0].mxu0
        %v1650 = vadd.f32 %v1431, %v1649
        %v1651 = vpop.f32.mrb[0].mxu0
        %v1652 = vadd.f32 %v1435, %v1651
        %1653 = vmatprep.mubr.f32.mxu0 0.0
        %1654 = vmatmul.mubr.f32.gmra.mrb[0].mxu0 %v1467
        %v1655 = vpop.f32.mrb[0].mxu0
        %v1656 = vadd.f32 %v1431, %v1655
        %v1657 = vpop.f32.mrb[0].mxu0
        %v1658 = vadd.f32 %v1435, %v1657
        %1659 = vmatprep.mubr.f32.mxu0 0.0
        %1660 = vmatmul.mubr.f32.gmra.mrb[0].mxu0 %v1470
        %v1661 = vpop.f32.mrb[0].mxu0
        %v1662 = vadd.f32 %v1431, %v1661
        %v1663 = vpop.f32.mrb[0].mxu0
        %v1664 = vadd.f32 %v1435, %v1663
        %1665 = vmatprep.mubr.f32.mxu0 0.0
        %1666 = vmatmul.mubr.f32.gmra.mrb[0].mxu0 %v1473
        %v1667 = vpop.f32.mrb[0].mxu0
        %v1668 = vadd.f32 %v1431, %v1667
        %v1669 = vpop.f32.mrb[0].mxu0
        %v1670 = vadd.f32 %v1435, %v1669
        %1671 = vmatprep.mubr.f32.mxu0 0.0
        %1672 = vmatmul.mubr.f32.gmra.mrb[0].mxu0 %v1476
        %v1673 = vpop.f32.mrb[0].mxu0
        %v1674 = vadd.f32 %v1431, %v1673
        %v1675 = vpop.f32.mrb[0].mxu0
        %v1676 = vadd.f32 %v1435, %v1675
        %1677 = vmatprep.mubr.f32.mxu0 0.0
        %1678 = vmatmul.mubr.f32.gmra.mrb[0].mxu0 %v1479
        %v1679 = vpop.f32.mrb[0].mxu0
        %v1680 = vadd.f32 %v1431, %v1679
        %v1681 = vpop.f32.mrb[0].mxu0
        %v1682 = vadd.f32 %v1435, %v1681
        %1683 = vmatprep.mubr.f32.mxu0 0.0
        %1684 = vmatmul.mubr.f32.gmra.mrb[0].mxu0 %v1482
        %v1685 = vpop.f32.mrb[0].mxu0
        %v1686 = vadd.f32 %v1431, %v1685
        %v1687 = vpop.f32.mrb[0].mxu0
        %v1688 = vadd.f32 %v1435, %v1687
        %1689 = vmatprep.mubr.f32.mxu0 0.0
        %1690 = vmatmul.mubr.f32.gmra.mrb[0].mxu0 %v1485
        %v1691 = vpop.f32.mrb[0].mxu0
        %v1692 = vadd.f32 %v1431, %v1691
        %v1693 = vpop.f32.mrb[0].mxu0
        %v1694 = vadd.f32 %v1435, %v1693
        %1695 = vmatprep.mubr.f32.mxu0 0.0
        %1696 = vmatmul.mubr.f32.gmra.mrb[0].mxu0 %v1488
        %v1697 = vpop.f32.mrb[0].mxu0
        %v1698 = vadd.f32 %v1431, %v1697
        %v1699 = vpop.f32.mrb[0].mxu0
        %v1700 = vadd.f32 %v1435, %v1699
        %1701 = vmatprep.mubr.f32.mxu0 0.0
        %1702 = vmatmul.mubr.f32.gmra.mrb[0].mxu0 %v1491
        %v1703 = vpop.f32.mrb[0].mxu0
        %v1704 = vadd.f32 %v1431, %v1703
        %v1705 = vpop.f32.mrb[0].mxu0
        %v1706 = vadd.f32 %v1435, %v1705
        %1707 = vmatprep.mubr.f32.mxu0 0.0
        %1708 = vmatmul.mubr.f32.gmra.mrb[0].mxu0 %v1494
        %v1709 = vpop.f32.mrb[0].mxu0
        %v1710 = vadd.f32 %v1431, %v1709
        %v1711 = vpop.f32.mrb[0].mxu0
        %v1712 = vadd.f32 %v1435, %v1711
        %1713 = vmatprep.mubr.f32.mxu0 0.0
        %1714 = vmatmul.mubr.f32.gmra.mrb[0].mxu0 %v1497
        %v1715 = vpop.f32.mrb[0].mxu0
        %v1716 = vadd.f32 %v1431, %v1715
        %v1717 = vpop.f32.mrb[0].mxu0
        %v1718 = vadd.f32 %v1435, %v1717
        %1719 = vmatprep.mubr.f32.mxu0 0.0
        %1720 = vmatmul.mubr.f32.gmra.mrb[0].mxu0 %v1500
        %v1721 = vpop.f32.mrb[0].mxu0
        %v1722 = vadd.f32 %v1431, %v1721
        %v1723 = vpop.f32.mrb[0].mxu0
        %v1724 = vadd.f32 %v1435, %v1723
        %1725 = vmatprep.mubr.f32.mxu0 0.0
        %1726 = vmatmul.mubr.f32.gmra.mrb[0].mxu0 %v1503
        %v1727 = vpop.f32.mrb[0].mxu0
        %v1728 = vadd.f32 %v1431, %v1727
        %v1729 = vpop.f32.mrb[0].mxu0
        %v1730 = vadd.f32 %v1435, %v1729
        %1731 = vmatprep.mubr.f32.mxu0 0.0
        %1732 = vmatmul.mubr.f32.gmra.mrb[0].mxu0 %v1506
        %v1733 = vpop.f32.mrb[0].mxu0
        %v1734 = vadd.f32 %v1431, %v1733
        %v1735 = vpop.f32.mrb[0].mxu0
        %v1736 = vadd.f32 %v1435, %v1735
        %1737 = vmatprep.mubr.f32.mxu0 0.0
        %1738 = vmatmul.mubr.f32.gmra.mrb[0].mxu0 %v1509
        %v1739 = vpop.f32.mrb[0].mxu0
        %v1740 = vadd.f32 %v1431, %v1739
        %v1741 = vpop.f32.mrb[0].mxu0
        %v1742 = vadd.f32 %v1435, %v1741
        %1743 = vmatprep.mubr.f32.mxu0 0.0
        %1744 = vmatmul.mubr.f32.gmra.mrb[0].mxu0 %v1512
        %v1745 = vpop.f32.mrb[0].mxu0
        %v1746 = vadd.f32 %v1431, %v1745
        %v1747 = vpop.f32.mrb[0].mxu0
        %v1748 = vadd.f32 %v1435, %v1747
        %1749 = vmatprep.mubr.f32.mxu0 0.0
        %1750 = vmatmul.mubr.f32.gmra.mrb[0].mxu0 %v1515
        %v1751 = vpop.f32.mrb[0].mxu0
        %v1752 = vadd.f32 %v1431, %v1751
        %v1753 = vpop.f32.mrb[0].mxu0
        %v1754 = vadd.f32 %v1435, %v1753
        %1755 = vmatprep.mubr.f32.mxu0 0.0
        %1756 = vmatmul.mubr.f32.gmra.mrb[0].mxu0 %v1518
        %v1757 = vpop.f32.mrb[0].mxu0
        %v1758 = vadd.f32 %v1431, %v1757
        %v1759 = vpop.f32.mrb[0].mxu0
        %v1760 = vadd.f32 %v1435, %v1759
        %1761 = vmatprep.mubr.f32.mxu0 0.0
        %1762 = vmatmul.mubr.f32.gmra.mrb[0].mxu0 %v1521
        %v1763 = vpop.f32.mrb[0].mxu0
        %v1764 = vadd.f32 %v1431, %v1763
        %v1765 = vpop.f32.mrb[0].mxu0
        %v1766 = vadd.f32 %v1435, %v1765
        %1767 = vmatprep.mubr.f32.mxu0 0.0
        %1768 = vmatmul.mubr.f32.gmra.mrb[0].mxu0 %v1524
        %v1769 = vpop.f32.mrb[0].mxu0
        %v1770 = vadd.f32 %v1431, %v1769
        %v1771 = vpop.f32.mrb[0].mxu0
        %v1772 = vadd.f32 %v1435, %v1771
        %1773 = vmatprep.mubr.f32.mxu0 0.0
        %1774 = vmatmul.mubr.f32.gmra.mrb[0].mxu0 %v1527
        %v1775 = vpop.f32.mrb[0].mxu0
        %v1776 = vadd.f32 %v1431, %v1775
        %v1777 = vpop.f32.mrb[0].mxu0
        %v1778 = vadd.f32 %v1435, %v1777
        %1779 = vmatprep.mubr.f32.mxu0 0.0
        %1780 = vmatmul.mubr.f32.gmra.mrb[0].mxu0 %v1530
        %v1781 = vpop.f32.mrb[0].mxu0
        %v1782 = vadd.f32 %v1431, %v1781
        %v1783 = vpop.f32.mrb[0].mxu0
        %v1784 = vadd.f32 %v1435, %v1783
        %1785 = vmatprep.mubr.f32.mxu0 0.0
        %1786 = vmatmul.mubr.f32.gmra.mrb[0].mxu0 %v1533
        %v1787 = vpop.f32.mrb[0].mxu0
        %v1788 = vadd.f32 %v1431, %v1787
        %v1789 = vpop.f32.mrb[0].mxu0
        %v1790 = vadd.f32 %v1435, %v1789
        %1791 = vdwg.mxu0
        %v1792 = vadd.f32 %v1602, %v1202
        %v1793 = vadd.f32 %v1604, %v1204
        %v1794 = vadd.f32 %v1608, %v1208
        %v1795 = vadd.f32 %v1610, %v1210
        %v1796 = vadd.f32 %v1614, %v1214
        %v1797 = vadd.f32 %v1616, %v1216
        %v1798 = vadd.f32 %v1620, %v1220
        %v1799 = vadd.f32 %v1622, %v1222
        %v1800 = vadd.f32 %v1626, %v1226
        %v1801 = vadd.f32 %v1628, %v1228
        %v1802 = vadd.f32 %v1632, %v1232
        %v1803 = vadd.f32 %v1634, %v1234
        %v1804 = vadd.f32 %v1638, %v1238
        %v1805 = vadd.f32 %v1640, %v1240
        %v1806 = vadd.f32 %v1644, %v1244
        %v1807 = vadd.f32 %v1646, %v1246
        %v1808 = vadd.f32 %v1650, %v1250
        %v1809 = vadd.f32 %v1652, %v1252
        %v1810 = vadd.f32 %v1656, %v1256
        %v1811 = vadd.f32 %v1658, %v1258
        %v1812 = vadd.f32 %v1662, %v1262
        %v1813 = vadd.f32 %v1664, %v1264
        %v1814 = vadd.f32 %v1668, %v1268
        %v1815 = vadd.f32 %v1670, %v1270
        %v1816 = vadd.f32 %v1674, %v1274
        %v1817 = vadd.f32 %v1676, %v1276
        %v1818 = vadd.f32 %v1680, %v1280
        %v1819 = vadd.f32 %v1682, %v1282
        %v1820 = vadd.f32 %v1686, %v1286
        %v1821 = vadd.f32 %v1688, %v1288
        %v1822 = vadd.f32 %v1692, %v1292
        %v1823 = vadd.f32 %v1694, %v1294
        %v1824 = vadd.f32 %v1698, %v1298
        %v1825 = vadd.f32 %v1700, %v1300
        %v1826 = vadd.f32 %v1704, %v1304
        %v1827 = vadd.f32 %v1706, %v1306
        %v1828 = vadd.f32 %v1710, %v1310
        %v1829 = vadd.f32 %v1712, %v1312
        %v1830 = vadd.f32 %v1716, %v1316
        %v1831 = vadd.f32 %v1718, %v1318
        %v1832 = vadd.f32 %v1722, %v1322
        %v1833 = vadd.f32 %v1724, %v1324
        %v1834 = vadd.f32 %v1728, %v1328
        %v1835 = vadd.f32 %v1730, %v1330
        %v1836 = vadd.f32 %v1734, %v1334
        %v1837 = vadd.f32 %v1736, %v1336
        %v1838 = vadd.f32 %v1740, %v1340
        %v1839 = vadd.f32 %v1742, %v1342
        %v1840 = vadd.f32 %v1746, %v1346
        %v1841 = vadd.f32 %v1748, %v1348
        %v1842 = vadd.f32 %v1752, %v1352
        %v1843 = vadd.f32 %v1754, %v1354
        %v1844 = vadd.f32 %v1758, %v1358
        %v1845 = vadd.f32 %v1760, %v1360
        %v1846 = vadd.f32 %v1764, %v1364
        %v1847 = vadd.f32 %v1766, %v1366
        %v1848 = vadd.f32 %v1770, %v1370
        %v1849 = vadd.f32 %v1772, %v1372
        %v1850 = vadd.f32 %v1776, %v1376
        %v1851 = vadd.f32 %v1778, %v1378
        %v1852 = vadd.f32 %v1782, %v1382
        %v1853 = vadd.f32 %v1784, %v1384
        %v1854 = vadd.f32 %v1788, %v1388
        %v1855 = vadd.f32 %v1790, %v1390
        %1856 = vst [vmem:[%s503] sm:$0xff] %v1792
        %1857 = vst [vmem:[%s503 + $0x8] sm:$0xff] %v1793
        %1858 = vst [vmem:[%s503 + $0x10] sm:$0xff] %v1794
        %1859 = vst [vmem:[%s503 + $0x18] sm:$0xff] %v1795
        %1860 = vst [vmem:[%s503 + $0x20] sm:$0xff] %v1796
        %1861 = vst [vmem:[%s503 + $0x28] sm:$0xff] %v1797
        %1862 = vst [vmem:[%s503 + $0x30] sm:$0xff] %v1798
        %1863 = vst [vmem:[%s503 + $0x38] sm:$0xff] %v1799
        %1864 = vst [vmem:[%s503 + $0x40] sm:$0xff] %v1800
        %1865 = vst [vmem:[%s503 + $0x48] sm:$0xff] %v1801
        %1866 = vst [vmem:[%s503 + $0x50] sm:$0xff] %v1802
        %1867 = vst [vmem:[%s503 + $0x58] sm:$0xff] %v1803
        %1868 = vst [vmem:[%s503 + $0x60] sm:$0xff] %v1804
        %1869 = vst [vmem:[%s503 + $0x68] sm:$0xff] %v1805
        %1870 = vst [vmem:[%s503 + $0x70] sm:$0xff] %v1806
        %1871 = vst [vmem:[%s503 + $0x78] sm:$0xff] %v1807
        %1872 = vst [vmem:[%s503 + $0x80] sm:$0xff] %v1808
        %1873 = vst [vmem:[%s503 + $0x88] sm:$0xff] %v1809
        %1874 = vst [vmem:[%s503 + $0x90] sm:$0xff] %v1810
        %1875 = vst [vmem:[%s503 + $0x98] sm:$0xff] %v1811
        %1876 = vst [vmem:[%s503 + $0xa0] sm:$0xff] %v1812
        %1877 = vst [vmem:[%s503 + $0xa8] sm:$0xff] %v1813
        %1878 = vst [vmem:[%s503 + $0xb0] sm:$0xff] %v1814
        %1879 = vst [vmem:[%s503 + $0xb8] sm:$0xff] %v1815
        %1880 = vst [vmem:[%s503 + $0xc0] sm:$0xff] %v1816
        %1881 = vst [vmem:[%s503 + $0xc8] sm:$0xff] %v1817
        %1882 = vst [vmem:[%s503 + $0xd0] sm:$0xff] %v1818
        %1883 = vst [vmem:[%s503 + $0xd8] sm:$0xff] %v1819
        %1884 = vst [vmem:[%s503 + $0xe0] sm:$0xff] %v1820
        %1885 = vst [vmem:[%s503 + $0xe8] sm:$0xff] %v1821
        %1886 = vst [vmem:[%s503 + $0xf0] sm:$0xff] %v1822
        %1887 = vst [vmem:[%s503 + $0xf8] sm:$0xff] %v1823
        %1888 = vst [vmem:[%s503 + $0x100] sm:$0xff] %v1824
        %1889 = vst [vmem:[%s503 + $0x108] sm:$0xff] %v1825
        %1890 = vst [vmem:[%s503 + $0x110] sm:$0xff] %v1826
        %1891 = vst [vmem:[%s503 + $0x118] sm:$0xff] %v1827
        %1892 = vst [vmem:[%s503 + $0x120] sm:$0xff] %v1828
        %1893 = vst [vmem:[%s503 + $0x128] sm:$0xff] %v1829
        %1894 = vst [vmem:[%s503 + $0x130] sm:$0xff] %v1830
        %1895 = vst [vmem:[%s503 + $0x138] sm:$0xff] %v1831
        %1896 = vst [vmem:[%s503 + $0x140] sm:$0xff] %v1832
        %1897 = vst [vmem:[%s503 + $0x148] sm:$0xff] %v1833
        %1898 = vst [vmem:[%s503 + $0x150] sm:$0xff] %v1834
        %1899 = vst [vmem:[%s503 + $0x158] sm:$0xff] %v1835
        %1900 = vst [vmem:[%s503 + $0x160] sm:$0xff] %v1836
        %1901 = vst [vmem:[%s503 + $0x168] sm:$0xff] %v1837
        %1902 = vst [vmem:[%s503 + $0x170] sm:$0xff] %v1838
        %1903 = vst [vmem:[%s503 + $0x178] sm:$0xff] %v1839
        %1904 = vst [vmem:[%s503 + $0x180] sm:$0xff] %v1840
        %1905 = vst [vmem:[%s503 + $0x188] sm:$0xff] %v1841
        %1906 = vst [vmem:[%s503 + $0x190] sm:$0xff] %v1842
        %1907 = vst [vmem:[%s503 + $0x198] sm:$0xff] %v1843
        %1908 = vst [vmem:[%s503 + $0x1a0] sm:$0xff] %v1844
        %1909 = vst [vmem:[%s503 + $0x1a8] sm:$0xff] %v1845
        %1910 = vst [vmem:[%s503 + $0x1b0] sm:$0xff] %v1846
        %1911 = vst [vmem:[%s503 + $0x1b8] sm:$0xff] %v1847
        %1912 = vst [vmem:[%s503 + $0x1c0] sm:$0xff] %v1848
        %1913 = vst [vmem:[%s503 + $0x1c8] sm:$0xff] %v1849
        %1914 = vst [vmem:[%s503 + $0x1d0] sm:$0xff] %v1850
        %1915 = vst [vmem:[%s503 + $0x1d8] sm:$0xff] %v1851
        %1916 = vst [vmem:[%s503 + $0x1e0] sm:$0xff] %v1852
        %1917 = vst [vmem:[%s503 + $0x1e8] sm:$0xff] %v1853
        %1918 = vst [vmem:[%s503 + $0x1f0] sm:$0xff] %v1854
        %1919 = vst [vmem:[%s503 + $0x1f8] sm:$0xff] %v1855
        %s1920 = sand.u32 %s305, 1
        %s1921 = scalar_lea.sflag [#allocation3], %s1920
        %s1922 = sand.u32 %s305, 1
        %s1923 = smul.addr %s1922, 512
        %s1924 = scalar_lea.vmem [#allocation2], %s1923
        %s1925 = sand.u32 %s333, 1
        %s1926 = scalar_lea.sflag [#allocation5], %s1925
        %s1927 = sand.u32 %s333, 1
        %s1928 = smul.addr %s1927, 128
        %s1929 = scalar_lea.vmem [#allocation4], %s1928
        %s1930 = sadd.s32 %s35, %s36
        %s1931 = smul.u32 2, %s1930
        %p1932 = scmp.lt.s32.totalorder %s1931, 3
        %s1933 = scalar_select %p1932, %s1931, 3
        %s1934 = smul.addr %s1933, 2
        %s1935 = smul.addr %s1934, 8
        %s1936 = scalar_lea.vmem %s13, %s1935
        // Predicated region
        $region65: #{get_fpn_features.1} parent=63 // pred_check
          %p1937 = pneg %p315
        $region66: #{get_fpn_features.1} parent=63 // pred_check_branch
          %1939 = sbr.rel (%p1937) target = $region68
        $region67: #{get_fpn_features.1} parent=63 // pred_region
          %s1940 = sadd.s32 %s35, %s36
          %s1941 = smul.u32 32, %s1940
          %s1943 = ssub.s32 8192, 8192
          %1944 = vsyncadd %s1921, %s1943
          %s1945 = smul.addr %s1941, 2
          %s1946 = smul.addr %s1945, 128
          %s1947 = scalar_lea.hbm %s11, %s1946
          %s1948 = sshll.u32 %s1924, 4
          %s1949 = int_to_ptr.vmem [resolvable:$true] %s1948
          %1954 = dma.vmem_to_hbm [thread:$0]  %s1949, 8192, %s1947, %s1921, 256, 256, 16
        $region68: #{get_fpn_features.1} parent=63 // pred_fallthru
          _
        // Predicated region
        $region69: #{get_fpn_features.1} parent=63 // pred_check
          %p1955 = pneg %p343
        $region70: #{get_fpn_features.1} parent=63 // pred_check_branch
          %1957 = sbr.rel (%p1955) target = $region72
        $region71: #{get_fpn_features.1} parent=63 // pred_region
          %s1958 = sadd.s32 %s35, %s36
          %s1959 = smul.u32 8, %s1958
          %s1961 = ssub.s32 2048, 2048
          %1962 = vsyncadd %s1926, %s1961
          %s1963 = smul.addr %s1959, 2
          %s1964 = smul.addr %s1963, 128
          %s1965 = scalar_lea.hbm %s12, %s1964
          %s1966 = sshll.u32 %s1929, 4
          %s1967 = int_to_ptr.vmem [resolvable:$true] %s1966
          %1972 = dma.vmem_to_hbm [thread:$0]  %s1967, 2048, %s1965, %s1926, 256, 256, 16
        $region72: #{get_fpn_features.1} parent=63 // pred_fallthru
          _
        // Predicated region
        $region73: #{get_fpn_features.1} parent=63 // pred_check
          %p1973 = pneg %p371
        $region74: #{get_fpn_features.1} parent=63 // pred_check_branch
          %1975 = sbr.rel (%p1973) target = $region76
        $region75: #{get_fpn_features.1} parent=63 // pred_region
          %s1976 = sadd.s32 %s35, %s36
          %s1977 = smul.u32 2, %s1976
        $region76: #{get_fpn_features.1} parent=63 // pred_fallthru
          _
      $region64: #{get_fpn_features.1} parent=5 // pred_fallthru
        _
      %p1978 = scmp.le.s32.totalorder 2, %s26
      // Predicated region
      $region77: #{get_fpn_features.1} parent=5 // pred_check
        %p1979 = pneg %p1978
      $region78: #{get_fpn_features.1} parent=5 // pred_check_branch
        %1981 = sbr.rel (%p1979) target = $region80
      $region79: #{get_fpn_features.1} parent=5 // pred_region
        %s1982 = ssub.s32 %s26, 2
        // Predicated region
        $region81: #{get_fpn_features.1} parent=79 // pred_check
          %p1983 = pneg %p321
        $region82: #{get_fpn_features.1} parent=79 // pred_check_branch
          %1985 = sbr.rel (%p1983) target = $region84
        $region83: #{get_fpn_features.1} parent=79 // pred_region
          %s1986 = sand.u32 %s306, 1
          %s1987 = scalar_lea.sflag [#allocation3], %s1986
          %s1988 = sand.u32 %s306, 1
          %s1989 = smul.addr %s1988, 512
          %s1990 = scalar_lea.vmem [#allocation2], %s1989
          %1991 = dma.done %s1987, 8192
        $region84: #{get_fpn_features.1} parent=79 // pred_fallthru
          _
        // Predicated region
        $region85: #{get_fpn_features.1} parent=79 // pred_check
          %p1992 = pneg %p349
        $region86: #{get_fpn_features.1} parent=79 // pred_check_branch
          %1994 = sbr.rel (%p1992) target = $region88
        $region87: #{get_fpn_features.1} parent=79 // pred_region
          %s1995 = sand.u32 %s334, 1
          %s1996 = scalar_lea.sflag [#allocation5], %s1995
          %s1997 = sand.u32 %s334, 1
          %s1998 = smul.addr %s1997, 128
          %s1999 = scalar_lea.vmem [#allocation4], %s1998
          %2000 = dma.done %s1996, 2048
        $region88: #{get_fpn_features.1} parent=79 // pred_fallthru
          _
        // Predicated region
        $region89: #{get_fpn_features.1} parent=79 // pred_check
          %p2001 = pneg %p377
        $region90: #{get_fpn_features.1} parent=79 // pred_check_branch
          %2003 = sbr.rel (%p2001) target = $region92
        $region91: #{get_fpn_features.1} parent=79 // pred_region
          %s2004 = sadd.s32 %s37, %s38
          %s2005 = smul.u32 2, %s2004
          %p2006 = scmp.lt.s32.totalorder %s2005, 3
          %s2007 = scalar_select %p2006, %s2005, 3
          %s2008 = smul.addr %s2007, 2
          %s2009 = smul.addr %s2008, 8
          %s2010 = scalar_lea.vmem %s13, %s2009
        $region92: #{get_fpn_features.1} parent=79 // pred_fallthru
          _
      $region80: #{get_fpn_features.1} parent=5 // pred_fallthru
        _
    $region6: #{get_fpn_features.1} parent=1 // loop_footer
      %s30 = sadd.s32 1, %s26
    $region7: #{get_fpn_features.1} parent=1 // loop_footer_branch
      %25 = sbr.rel target = $region3
    $region8: #{get_fpn_features.1} parent=1 // loop_exit
      _
    %2011 = vsyncpa [#allocation3], 1
    %s2012 = scalar_lea.sflag [#allocation3], 1
    %2013 = vsyncpa %s2012, 1
    %2014 = vsyncpa [#allocation5], 1
    %s2015 = scalar_lea.sflag [#allocation5], 1
    %2016 = vsyncpa %s2015, 1

</llo_original>
